<compile_context>
chip_gen: v6e
topology: v6e:2x2x1
jax: 0.10.0
libtpu: 0.0.40
codegen_flags: <defaults>
</compile_context>

<pallas_src>
import jax
import jax.numpy as jnp
from jax.experimental import pallas as pl
from jax.experimental.pallas import tpu as pltpu

N_IN = 28 * 28      # 784
N_IN_PAD = 896      # 7 * 128  (padded contraction dim for fc1)
N_HID = 64
N_OUT = 10
N_OUT_PAD = 128     # lane-dense output slab width


def mlp_kernel(x_ref, w1_ref, b1_ref, w2_ref, b2_ref, w3_ref, b3_ref,
               w4_ref, b4_ref, o_ref):
    x = x_ref[...]

    # fc1 + relu
    h = jnp.dot(x, w1_ref[...], preferred_element_type=jnp.float32) + b1_ref[...]
    h = jnp.maximum(h, 0.0)
    # fc2 + relu
    h = jnp.dot(h, w2_ref[...], preferred_element_type=jnp.float32) + b2_ref[...]
    h = jnp.maximum(h, 0.0)
    # fc3 + relu
    h = jnp.dot(h, w3_ref[...], preferred_element_type=jnp.float32) + b3_ref[...]
    h = jnp.maximum(h, 0.0)
    # fc4 (logits), padded to 128 output lanes (padded weight cols / bias are zero)
    logits = jnp.dot(h, w4_ref[...], preferred_element_type=jnp.float32) + b4_ref[...]

    # log_softmax over the 10 real lanes only (padded lanes masked out of max / sum)
    lane = jax.lax.broadcasted_iota(jnp.int32, logits.shape, 1)
    valid = lane < N_OUT
    neg = jnp.float32(-1e30)
    m = jnp.max(jnp.where(valid, logits, neg), axis=-1, keepdims=True)
    shifted = logits - m
    exps = jnp.exp(jnp.where(valid, shifted, neg))   # padded lanes -> exp(~-1e30) = 0
    lse = jnp.log(jnp.sum(exps, axis=-1, keepdims=True))
    # Lane-dense store of the full 128-wide slab; padded lanes hold don't-care values
    # that the wrapper slices off.
    o_ref[...] = shifted - lse


def net_forward(x, params, *, tile_b=128):
    """x: (B, 784) float32 -> (B, 10) float32 log-probabilities."""
    w1, b1, w2, b2, w3, b3, w4, b4 = params
    B, d_in = x.shape
    assert d_in == N_IN

    # Pad fc1 contraction dim 784 -> 896 (zero columns/rows contribute nothing).
    x_p = jnp.pad(x, ((0, 0), (0, N_IN_PAD - N_IN)))
    w1_p = jnp.pad(w1, ((0, N_IN_PAD - N_IN), (0, 0)))

    # Pad fc4 output features 10 -> 128 so the output store is lane-dense.
    w4_p = jnp.pad(w4, ((0, 0), (0, N_OUT_PAD - N_OUT)))
    b4_p = jnp.pad(b4, ((0, 0), (0, N_OUT_PAD - N_OUT)))

    # Pad batch to a multiple of tile_b (padded rows sliced off below).
    num_tiles = pl.cdiv(B, tile_b)
    b_pad = num_tiles * tile_b
    if b_pad != B:
        x_p = jnp.pad(x_p, ((0, b_pad - B), (0, 0)))

    const = lambda shape: pl.BlockSpec(shape, lambda i: (0, 0))

    out_padded = pl.pallas_call(
        mlp_kernel,
        out_shape=jax.ShapeDtypeStruct((b_pad, N_OUT_PAD), jnp.float32),
        grid_spec=pltpu.PrefetchScalarGridSpec(
            num_scalar_prefetch=0,
            grid=(num_tiles,),
            in_specs=[
                pl.BlockSpec((tile_b, N_IN_PAD), lambda i: (i, 0)),   # x: moves with grid
                const(w1_p.shape), const(b1.shape),                   # weights: VMEM-resident
                const(w2.shape), const(b2.shape),
                const(w3.shape), const(b3.shape),
                const(w4_p.shape), const(b4_p.shape),
            ],
            out_specs=pl.BlockSpec((tile_b, N_OUT_PAD), lambda i: (i, 0)),
        ),
        compiler_params=pltpu.CompilerParams(
            dimension_semantics=("parallel",)),   # shards batch tiles across v7x's 2 TCs
    )(x_p, w1_p, b1, w2, b2, w3, b3, w4_p, b4_p)

    return out_padded[:B, :N_OUT]


def init_params(key):
    """Deterministic init matching nn.Linear shapes (784->64->64->64->10)."""
    dims = [(N_IN, N_HID), (N_HID, N_HID), (N_HID, N_HID), (N_HID, N_OUT)]
    params = []
    for i, (d_in, d_out) in enumerate(dims):
        kw, kb = jax.random.split(jax.random.fold_in(key, i))
        bound = 1.0 / jnp.sqrt(d_in)
        # stored transposed relative to PyTorch: (d_in, d_out) so kernel does x @ W
        w = jax.random.uniform(kw, (d_in, d_out), jnp.float32, -bound, bound)
        b = jax.random.uniform(kb, (1, d_out), jnp.float32, -bound, bound)
        params.extend([w, b])
    return tuple(params)


def reference_forward(x, params):
    w1, b1, w2, b2, w3, b3, w4, b4 = params
    h = jax.nn.relu(x @ w1 + b1)
    h = jax.nn.relu(h @ w2 + b2)
    h = jax.nn.relu(h @ w3 + b3)
    logits = h @ w4 + b4
    return jax.nn.log_softmax(logits, axis=1)


if __name__ == "__main__":
    key = jax.random.PRNGKey(0)
    params = init_params(key)

    # Batch chosen to exercise batch tiling (2 grid steps at TILE_B=128) while
    # staying small; input features are 28*28 = 784 as the module implies.
    B = 256
    x = jax.random.normal(jax.random.fold_in(key, 100), (B, N_IN), jnp.float32)

    out = net_forward(x, params, tile_b=128)
    out = jax.block_until_ready(out)

    ref = reference_forward(x, params)
    assert out.shape == (B, N_OUT)
    assert jnp.allclose(out, ref, atol=1e-4, rtol=1e-4)

    # also check a batch that is NOT a multiple of the tile (padding path)
    xb = x[:50]
    outb = jax.block_until_ready(net_forward(xb, params, tile_b=128))
    assert outb.shape == (50, N_OUT)
    assert jnp.allclose(outb, ref[:50], atol=1e-4, rtol=1e-4)

    print("KERNEL_OK")
</pallas_src>

<mosaic_0001>
module attributes {stable_mosaic.version = 11 : i64} {
  func.func @mlp_kernel(%arg0: i32, %arg1: memref<128x896xf32, #tpu.memory_space<vmem>>, %arg2: memref<896x64xf32, #tpu.memory_space<vmem>>, %arg3: memref<1x64xf32, #tpu.memory_space<vmem>>, %arg4: memref<64x64xf32, #tpu.memory_space<vmem>>, %arg5: memref<1x64xf32, #tpu.memory_space<vmem>>, %arg6: memref<64x64xf32, #tpu.memory_space<vmem>>, %arg7: memref<1x64xf32, #tpu.memory_space<vmem>>, %arg8: memref<64x128xf32, #tpu.memory_space<vmem>>, %arg9: memref<1x128xf32, #tpu.memory_space<vmem>>, %arg10: memref<128x128xf32, #tpu.memory_space<vmem>>) attributes {dimension_semantics = [#tpu.dimension_semantics<parallel>], iteration_bounds = array<i64: 2>, scalar_prefetch = 0 : i64, scratch_operands = 0 : i64, tpu.core_type = #tpu.core_type<tc>, window_params = [{transform_indices = @transform_0, window_bounds = array<i64: 128, 896>}, {pipeline_mode = #tpu.pipeline_mode<synchronous>, transform_indices = @transform_1, window_bounds = array<i64: 896, 64>}, {pipeline_mode = #tpu.pipeline_mode<synchronous>, transform_indices = @transform_2, window_bounds = array<i64: 1, 64>}, {pipeline_mode = #tpu.pipeline_mode<synchronous>, transform_indices = @transform_3, window_bounds = array<i64: 64, 64>}, {pipeline_mode = #tpu.pipeline_mode<synchronous>, transform_indices = @transform_4, window_bounds = array<i64: 1, 64>}, {pipeline_mode = #tpu.pipeline_mode<synchronous>, transform_indices = @transform_5, window_bounds = array<i64: 64, 64>}, {pipeline_mode = #tpu.pipeline_mode<synchronous>, transform_indices = @transform_6, window_bounds = array<i64: 1, 64>}, {pipeline_mode = #tpu.pipeline_mode<synchronous>, transform_indices = @transform_7, window_bounds = array<i64: 64, 128>}, {pipeline_mode = #tpu.pipeline_mode<synchronous>, transform_indices = @transform_8, window_bounds = array<i64: 1, 128>}, {transform_indices = @transform_9, window_bounds = array<i64: 128, 128>}]} {
    %c0 = arith.constant 0 : index
    %c0_0 = arith.constant 0 : index
    %0 = vector.load %arg1[%c0, %c0_0] : memref<128x896xf32, #tpu.memory_space<vmem>>, vector<128x896xf32>
    %c0_1 = arith.constant 0 : index
    %c0_2 = arith.constant 0 : index
    %1 = vector.load %arg2[%c0_1, %c0_2] : memref<896x64xf32, #tpu.memory_space<vmem>>, vector<896x64xf32>
    %cst = arith.constant dense<0.000000e+00> : vector<128x64xf32>
    %2 = tpu.matmul %0, %1, %cst {dimension_numbers = #tpu.dot_dimension_numbers<[1], [0], [0], [1], [0, 0, 1, 1], [], []>} : vector<128x896xf32>, vector<896x64xf32>, vector<128x64xf32> -> vector<128x64xf32>
    %c0_3 = arith.constant 0 : index
    %c0_4 = arith.constant 0 : index
    %3 = vector.load %arg3[%c0_3, %c0_4] : memref<1x64xf32, #tpu.memory_space<vmem>>, vector<1x64xf32>
    %4 = vector.broadcast %3 : vector<1x64xf32> to vector<128x64xf32>
    %5 = arith.addf %2, %4 : vector<128x64xf32>
    %cst_5 = arith.constant 0.000000e+00 : f32
    %6 = vector.broadcast %cst_5 : f32 to vector<128x64xf32>
    %7 = arith.maximumf %5, %6 : vector<128x64xf32>
    %c0_6 = arith.constant 0 : index
    %c0_7 = arith.constant 0 : index
    %8 = vector.load %arg4[%c0_6, %c0_7] : memref<64x64xf32, #tpu.memory_space<vmem>>, vector<64x64xf32>
    %cst_8 = arith.constant dense<0.000000e+00> : vector<128x64xf32>
    %9 = tpu.matmul %7, %8, %cst_8 {dimension_numbers = #tpu.dot_dimension_numbers<[1], [0], [0], [1], [0, 0, 1, 1], [], []>} : vector<128x64xf32>, vector<64x64xf32>, vector<128x64xf32> -> vector<128x64xf32>
    %c0_9 = arith.constant 0 : index
    %c0_10 = arith.constant 0 : index
    %10 = vector.load %arg5[%c0_9, %c0_10] : memref<1x64xf32, #tpu.memory_space<vmem>>, vector<1x64xf32>
    %11 = vector.broadcast %10 : vector<1x64xf32> to vector<128x64xf32>
    %12 = arith.addf %9, %11 : vector<128x64xf32>
    %cst_11 = arith.constant 0.000000e+00 : f32
    %13 = vector.broadcast %cst_11 : f32 to vector<128x64xf32>
    %14 = arith.maximumf %12, %13 : vector<128x64xf32>
    %c0_12 = arith.constant 0 : index
    %c0_13 = arith.constant 0 : index
    %15 = vector.load %arg6[%c0_12, %c0_13] : memref<64x64xf32, #tpu.memory_space<vmem>>, vector<64x64xf32>
    %cst_14 = arith.constant dense<0.000000e+00> : vector<128x64xf32>
    %16 = tpu.matmul %14, %15, %cst_14 {dimension_numbers = #tpu.dot_dimension_numbers<[1], [0], [0], [1], [0, 0, 1, 1], [], []>} : vector<128x64xf32>, vector<64x64xf32>, vector<128x64xf32> -> vector<128x64xf32>
    %c0_15 = arith.constant 0 : index
    %c0_16 = arith.constant 0 : index
    %17 = vector.load %arg7[%c0_15, %c0_16] : memref<1x64xf32, #tpu.memory_space<vmem>>, vector<1x64xf32>
    %18 = vector.broadcast %17 : vector<1x64xf32> to vector<128x64xf32>
    %19 = arith.addf %16, %18 : vector<128x64xf32>
    %cst_17 = arith.constant 0.000000e+00 : f32
    %20 = vector.broadcast %cst_17 : f32 to vector<128x64xf32>
    %21 = arith.maximumf %19, %20 : vector<128x64xf32>
    %c0_18 = arith.constant 0 : index
    %c0_19 = arith.constant 0 : index
    %22 = vector.load %arg8[%c0_18, %c0_19] : memref<64x128xf32, #tpu.memory_space<vmem>>, vector<64x128xf32>
    %cst_20 = arith.constant dense<0.000000e+00> : vector<128x128xf32>
    %23 = tpu.matmul %21, %22, %cst_20 {dimension_numbers = #tpu.dot_dimension_numbers<[1], [0], [0], [1], [0, 0, 1, 1], [], []>} : vector<128x64xf32>, vector<64x128xf32>, vector<128x128xf32> -> vector<128x128xf32>
    %c0_21 = arith.constant 0 : index
    %c0_22 = arith.constant 0 : index
    %24 = vector.load %arg9[%c0_21, %c0_22] : memref<1x128xf32, #tpu.memory_space<vmem>>, vector<1x128xf32>
    %25 = vector.broadcast %24 : vector<1x128xf32> to vector<128x128xf32>
    %26 = arith.addf %23, %25 : vector<128x128xf32>
    %27 = tpu.iota {dimensions = array<i32: 1>} : vector<128x128xi32>
    %c10_i32 = arith.constant 10 : i32
    %28 = vector.broadcast %c10_i32 : i32 to vector<128x128xi32>
    %29 = arith.cmpi slt, %27, %28 : vector<128x128xi32>
    %cst_23 = arith.constant -1.000000e+30 : f32
    %30 = vector.broadcast %cst_23 : f32 to vector<128x128xf32>
    %31 = arith.select %29, %26, %30 : vector<128x128xi1>, vector<128x128xf32>
    %cst_24 = arith.constant dense<0xFF800000> : vector<128xf32>
    %32 = vector.multi_reduction <maximumf>, %31, %cst_24 [1] : vector<128x128xf32> to vector<128xf32>
    %33 = vector.shape_cast %32 : vector<128xf32> to vector<128x1xf32>
    %34 = vector.broadcast %33 : vector<128x1xf32> to vector<128x128xf32>
    %35 = arith.subf %26, %34 : vector<128x128xf32>
    %cst_25 = arith.constant -1.000000e+30 : f32
    %36 = vector.broadcast %cst_25 : f32 to vector<128x128xf32>
    %37 = arith.select %29, %35, %36 : vector<128x128xi1>, vector<128x128xf32>
    %38 = math.exp %37 : vector<128x128xf32>
    %cst_26 = arith.constant dense<0.000000e+00> : vector<128xf32>
    %39 = vector.multi_reduction <add>, %38, %cst_26 [1] : vector<128x128xf32> to vector<128xf32>
    %40 = vector.shape_cast %39 : vector<128xf32> to vector<128x1xf32>
    %41 = math.log %40 : vector<128x1xf32>
    %42 = vector.broadcast %41 : vector<128x1xf32> to vector<128x128xf32>
    %43 = arith.subf %35, %42 : vector<128x128xf32>
    %c0_27 = arith.constant 0 : index
    %c0_28 = arith.constant 0 : index
    %44 = vector.load %arg10[%c0_27, %c0_28] : memref<128x128xf32, #tpu.memory_space<vmem>>, vector<128x128xf32>
    tpu.vector_store %arg10[%c0_27, %c0_28], %43 {strides = array<i32>} : memref<128x128xf32, #tpu.memory_space<vmem>>, vector<128x128xf32>,
    return
  }
  func.func @transform_0(%arg0: i32) -> (i32, i32) {
    %c0_i32 = arith.constant 0 : i32
    %c0_i32_0 = arith.constant 0 : i32
    return %arg0, %c0_i32 : i32, i32
  }
  func.func @transform_1(%arg0: i32) -> (i32, i32) {
    %c0_i32 = arith.constant 0 : i32
    %c0_i32_0 = arith.constant 0 : i32
    %c0_i32_1 = arith.constant 0 : i32
    return %c0_i32, %c0_i32_0 : i32, i32
  }
  func.func @transform_2(%arg0: i32) -> (i32, i32) {
    %c0_i32 = arith.constant 0 : i32
    %c0_i32_0 = arith.constant 0 : i32
    %c0_i32_1 = arith.constant 0 : i32
    return %c0_i32, %c0_i32_0 : i32, i32
  }
  func.func @transform_3(%arg0: i32) -> (i32, i32) {
    %c0_i32 = arith.constant 0 : i32
    %c0_i32_0 = arith.constant 0 : i32
    %c0_i32_1 = arith.constant 0 : i32
    return %c0_i32, %c0_i32_0 : i32, i32
  }
  func.func @transform_4(%arg0: i32) -> (i32, i32) {
    %c0_i32 = arith.constant 0 : i32
    %c0_i32_0 = arith.constant 0 : i32
    %c0_i32_1 = arith.constant 0 : i32
    return %c0_i32, %c0_i32_0 : i32, i32
  }
  func.func @transform_5(%arg0: i32) -> (i32, i32) {
    %c0_i32 = arith.constant 0 : i32
    %c0_i32_0 = arith.constant 0 : i32
    %c0_i32_1 = arith.constant 0 : i32
    return %c0_i32, %c0_i32_0 : i32, i32
  }
  func.func @transform_6(%arg0: i32) -> (i32, i32) {
    %c0_i32 = arith.constant 0 : i32
    %c0_i32_0 = arith.constant 0 : i32
    %c0_i32_1 = arith.constant 0 : i32
    return %c0_i32, %c0_i32_0 : i32, i32
  }
  func.func @transform_7(%arg0: i32) -> (i32, i32) {
    %c0_i32 = arith.constant 0 : i32
    %c0_i32_0 = arith.constant 0 : i32
    %c0_i32_1 = arith.constant 0 : i32
    return %c0_i32, %c0_i32_0 : i32, i32
  }
  func.func @transform_8(%arg0: i32) -> (i32, i32) {
    %c0_i32 = arith.constant 0 : i32
    %c0_i32_0 = arith.constant 0 : i32
    %c0_i32_1 = arith.constant 0 : i32
    return %c0_i32, %c0_i32_0 : i32, i32
  }
  func.func @transform_9(%arg0: i32) -> (i32, i32) {
    %c0_i32 = arith.constant 0 : i32
    %c0_i32_0 = arith.constant 0 : i32
    return %arg0, %c0_i32 : i32, i32
  }
}

</mosaic_0001>

<llo_original>
// kernel: tpu_custom_call.1
$region0: #{tpu_custom_call.1}
  #allocation0 [shape = 'u32[]', space=smem, size = 0x4, offset = 0x4, fixed_abs, tag = 'smem constant byte address 0x4 - core index']
  #allocation1 [shape = 'u32[144,128]{1,0:T(1,128)}', space=vmem, size = 0x12000, scoped, tag = 'internal scratch']
  %s0 = inlined_call_operand.hbm [shape: f32[256,896], index: 0, kind: input, shape index: {}]
  %s1 = inlined_call_operand.vmem [shape: f32[896,64], index: 1, kind: input, shape index: {}]
  %s2 = inlined_call_operand.vmem [shape: f32[1,64], index: 2, kind: input, shape index: {}]
  %s3 = inlined_call_operand.vmem [shape: f32[64,64], index: 3, kind: input, shape index: {}]
  %s4 = inlined_call_operand.vmem [shape: f32[1,64], index: 4, kind: input, shape index: {}]
  %s5 = inlined_call_operand.vmem [shape: f32[64,64], index: 5, kind: input, shape index: {}]
  %s6 = inlined_call_operand.vmem [shape: f32[1,64], index: 6, kind: input, shape index: {}]
  %s7 = inlined_call_operand.vmem [shape: f32[64,128], index: 7, kind: input, shape index: {}]
  %s8 = inlined_call_operand.vmem [shape: f32[1,128], index: 8, kind: input, shape index: {}]
  %s9 = inlined_call_operand.hbm [shape: f32[256,128], index: 9, kind: output, shape index: {}]
  %s10 = sld [smem:[#allocation0]]
  $region73: #{tpu_custom_call.1} parent=0
    _
  %s12 = ssub.s32 1, %s10
  %s13 = scalar_select 0, %s12, %s10
  $region1: #{tpu_custom_call.1} parent=0
    #allocation2 [shape = 'u8[917504]{0}', space=vmem, size = 0xe0000, scoped, tag = 'input window, operand 0']
    #allocation3 [shape = 's32[2]{0}', space=sflag, size = 0x8, scoped, tag = 'scoped memory for tpu_custom_call.1']
    #allocation4 [shape = 's32[2]{0}', space=sflag, size = 0x8, scoped, tag = 'scoped memory for tpu_custom_call.1']
    #allocation5 [shape = 'u8[131072]{0}', space=vmem, size = 0x20000, scoped, tag = 'output window, operand 0']
    %14 = vsyncpa [#allocation3], 0
    %s15 = scalar_lea.sflag [#allocation3], 1
    %16 = vsyncpa %s15, 0
    %17 = vsyncpa [#allocation4], 0
    %s18 = scalar_lea.sflag [#allocation4], 1
    %19 = vsyncpa %s18, 0
    loop: start=0, step=1, limit=4
    $region2: #{tpu_custom_call.1} parent=1 // loop_pre_header
      _
    $region3: #{tpu_custom_call.1} parent=1 // loop_header
      %s21 = sphi 0, %s25
      %p22 = scmp.ge.s32.totalorder %s21, 4
      %s31 = sphi 0, %s33
      %s34 = sphi 0, %s31
      %s35 = sphi 0, %s34
      %s51 = sphi 0, %s35
      %s55 = sphi 0, %s55
      %s57 = sphi 0, %s55
      %s58 = sphi 0, %s57
      %s72 = sphi 0, %s58
      %s76 = sphi 0, %s76
      %s78 = sphi 0, %s76
      %s79 = sphi 0, %s78
      %s93 = sphi 0, %s79
      %s97 = sphi 0, %s97
      %s99 = sphi 0, %s97
      %s100 = sphi 0, %s99
      %s114 = sphi 0, %s100
      %s118 = sphi 0, %s118
      %s120 = sphi 0, %s118
      %s121 = sphi 0, %s120
      %s135 = sphi 0, %s121
      %s139 = sphi 0, %s139
      %s141 = sphi 0, %s139
      %s142 = sphi 0, %s141
      %s156 = sphi 0, %s142
      %s160 = sphi 0, %s160
      %s162 = sphi 0, %s160
      %s163 = sphi 0, %s162
      %s177 = sphi 0, %s163
      %s181 = sphi 0, %s181
      %s183 = sphi 0, %s181
      %s184 = sphi 0, %s183
      %s198 = sphi 0, %s184
      %s202 = sphi 0, %s202
      %s204 = sphi 0, %s202
      %s205 = sphi 0, %s204
      %s219 = sphi 0, %s205
      %s225 = sphi 0, %s227
      %s228 = sphi 0, %s225
      %s229 = sphi 0, %s228
      %s245 = sphi 0, %s229
    $region4: #{tpu_custom_call.1} parent=1 // loop_header_branch
      %24 = sbr.rel (%p22) target = $region8
    $region5: #{tpu_custom_call.1} parent=1 // loop_body
      %s26 = ssub.s32 %s21, 1
      %s27 = ssub.s32 %s21, 2
      %s28 = sadd.s32 %s21, 1
      %s29 = ssub.s32 %s21, %s28
      %p30 = scmp.eq.s32.totalorder %s29, 0
      %s32 = sadd.s32 %s31, 1
      %s33 = scalar_select %p30, %s31, %s32
      %p36 = pneg %p30
      %p37 = scmp.eq.s32.totalorder %s21, 1
      %p38 = por %p36, %p37
      %p39 = scmp.ne.s32.totalorder %s31, %s34
      %p40 = scmp.eq.s32.totalorder %s21, 0
      %p41 = por %p39, %p40
      %p42 = scmp.ne.s32.totalorder %s31, %s34
      %p43 = scmp.eq.s32.totalorder %s26, 1
      %p44 = por %p42, %p43
      %p45 = scmp.ne.s32.totalorder %s34, %s35
      %p46 = scmp.eq.s32.totalorder %s26, 0
      %p47 = por %p45, %p46
      %p48 = scmp.ne.s32.totalorder %s34, %s35
      %p49 = scmp.eq.s32.totalorder %s27, 1
      %p50 = por %p48, %p49
      %p52 = scmp.ne.s32.totalorder %s35, %s51
      %p53 = scmp.eq.s32.totalorder %s27, 0
      %p54 = por %p52, %p53
      %s56 = sadd.s32 %s55, 1
      %p59 = scmp.eq.s32.totalorder %s21, 1
      %p60 = scmp.ne.s32.totalorder %s55, %s57
      %p61 = scmp.eq.s32.totalorder %s21, 0
      %p62 = por %p60, %p61
      %p63 = scmp.ne.s32.totalorder %s55, %s57
      %p64 = scmp.eq.s32.totalorder %s26, 1
      %p65 = por %p63, %p64
      %p66 = scmp.ne.s32.totalorder %s57, %s58
      %p67 = scmp.eq.s32.totalorder %s26, 0
      %p68 = por %p66, %p67
      %p69 = scmp.ne.s32.totalorder %s57, %s58
      %p70 = scmp.eq.s32.totalorder %s27, 1
      %p71 = por %p69, %p70
      %p73 = scmp.ne.s32.totalorder %s58, %s72
      %p74 = scmp.eq.s32.totalorder %s27, 0
      %p75 = por %p73, %p74
      %s77 = sadd.s32 %s76, 1
      %p80 = scmp.eq.s32.totalorder %s21, 1
      %p81 = scmp.ne.s32.totalorder %s76, %s78
      %p82 = scmp.eq.s32.totalorder %s21, 0
      %p83 = por %p81, %p82
      %p84 = scmp.ne.s32.totalorder %s76, %s78
      %p85 = scmp.eq.s32.totalorder %s26, 1
      %p86 = por %p84, %p85
      %p87 = scmp.ne.s32.totalorder %s78, %s79
      %p88 = scmp.eq.s32.totalorder %s26, 0
      %p89 = por %p87, %p88
      %p90 = scmp.ne.s32.totalorder %s78, %s79
      %p91 = scmp.eq.s32.totalorder %s27, 1
      %p92 = por %p90, %p91
      %p94 = scmp.ne.s32.totalorder %s79, %s93
      %p95 = scmp.eq.s32.totalorder %s27, 0
      %p96 = por %p94, %p95
      %s98 = sadd.s32 %s97, 1
      %p101 = scmp.eq.s32.totalorder %s21, 1
      %p102 = scmp.ne.s32.totalorder %s97, %s99
      %p103 = scmp.eq.s32.totalorder %s21, 0
      %p104 = por %p102, %p103
      %p105 = scmp.ne.s32.totalorder %s97, %s99
      %p106 = scmp.eq.s32.totalorder %s26, 1
      %p107 = por %p105, %p106
      %p108 = scmp.ne.s32.totalorder %s99, %s100
      %p109 = scmp.eq.s32.totalorder %s26, 0
      %p110 = por %p108, %p109
      %p111 = scmp.ne.s32.totalorder %s99, %s100
      %p112 = scmp.eq.s32.totalorder %s27, 1
      %p113 = por %p111, %p112
      %p115 = scmp.ne.s32.totalorder %s100, %s114
      %p116 = scmp.eq.s32.totalorder %s27, 0
      %p117 = por %p115, %p116
      %s119 = sadd.s32 %s118, 1
      %p122 = scmp.eq.s32.totalorder %s21, 1
      %p123 = scmp.ne.s32.totalorder %s118, %s120
      %p124 = scmp.eq.s32.totalorder %s21, 0
      %p125 = por %p123, %p124
      %p126 = scmp.ne.s32.totalorder %s118, %s120
      %p127 = scmp.eq.s32.totalorder %s26, 1
      %p128 = por %p126, %p127
      %p129 = scmp.ne.s32.totalorder %s120, %s121
      %p130 = scmp.eq.s32.totalorder %s26, 0
      %p131 = por %p129, %p130
      %p132 = scmp.ne.s32.totalorder %s120, %s121
      %p133 = scmp.eq.s32.totalorder %s27, 1
      %p134 = por %p132, %p133
      %p136 = scmp.ne.s32.totalorder %s121, %s135
      %p137 = scmp.eq.s32.totalorder %s27, 0
      %p138 = por %p136, %p137
      %s140 = sadd.s32 %s139, 1
      %p143 = scmp.eq.s32.totalorder %s21, 1
      %p144 = scmp.ne.s32.totalorder %s139, %s141
      %p145 = scmp.eq.s32.totalorder %s21, 0
      %p146 = por %p144, %p145
      %p147 = scmp.ne.s32.totalorder %s139, %s141
      %p148 = scmp.eq.s32.totalorder %s26, 1
      %p149 = por %p147, %p148
      %p150 = scmp.ne.s32.totalorder %s141, %s142
      %p151 = scmp.eq.s32.totalorder %s26, 0
      %p152 = por %p150, %p151
      %p153 = scmp.ne.s32.totalorder %s141, %s142
      %p154 = scmp.eq.s32.totalorder %s27, 1
      %p155 = por %p153, %p154
      %p157 = scmp.ne.s32.totalorder %s142, %s156
      %p158 = scmp.eq.s32.totalorder %s27, 0
      %p159 = por %p157, %p158
      %s161 = sadd.s32 %s160, 1
      %p164 = scmp.eq.s32.totalorder %s21, 1
      %p165 = scmp.ne.s32.totalorder %s160, %s162
      %p166 = scmp.eq.s32.totalorder %s21, 0
      %p167 = por %p165, %p166
      %p168 = scmp.ne.s32.totalorder %s160, %s162
      %p169 = scmp.eq.s32.totalorder %s26, 1
      %p170 = por %p168, %p169
      %p171 = scmp.ne.s32.totalorder %s162, %s163
      %p172 = scmp.eq.s32.totalorder %s26, 0
      %p173 = por %p171, %p172
      %p174 = scmp.ne.s32.totalorder %s162, %s163
      %p175 = scmp.eq.s32.totalorder %s27, 1
      %p176 = por %p174, %p175
      %p178 = scmp.ne.s32.totalorder %s163, %s177
      %p179 = scmp.eq.s32.totalorder %s27, 0
      %p180 = por %p178, %p179
      %s182 = sadd.s32 %s181, 1
      %p185 = scmp.eq.s32.totalorder %s21, 1
      %p186 = scmp.ne.s32.totalorder %s181, %s183
      %p187 = scmp.eq.s32.totalorder %s21, 0
      %p188 = por %p186, %p187
      %p189 = scmp.ne.s32.totalorder %s181, %s183
      %p190 = scmp.eq.s32.totalorder %s26, 1
      %p191 = por %p189, %p190
      %p192 = scmp.ne.s32.totalorder %s183, %s184
      %p193 = scmp.eq.s32.totalorder %s26, 0
      %p194 = por %p192, %p193
      %p195 = scmp.ne.s32.totalorder %s183, %s184
      %p196 = scmp.eq.s32.totalorder %s27, 1
      %p197 = por %p195, %p196
      %p199 = scmp.ne.s32.totalorder %s184, %s198
      %p200 = scmp.eq.s32.totalorder %s27, 0
      %p201 = por %p199, %p200
      %s203 = sadd.s32 %s202, 1
      %p206 = scmp.eq.s32.totalorder %s21, 1
      %p207 = scmp.ne.s32.totalorder %s202, %s204
      %p208 = scmp.eq.s32.totalorder %s21, 0
      %p209 = por %p207, %p208
      %p210 = scmp.ne.s32.totalorder %s202, %s204
      %p211 = scmp.eq.s32.totalorder %s26, 1
      %p212 = por %p210, %p211
      %p213 = scmp.ne.s32.totalorder %s204, %s205
      %p214 = scmp.eq.s32.totalorder %s26, 0
      %p215 = por %p213, %p214
      %p216 = scmp.ne.s32.totalorder %s204, %s205
      %p217 = scmp.eq.s32.totalorder %s27, 1
      %p218 = por %p216, %p217
      %p220 = scmp.ne.s32.totalorder %s205, %s219
      %p221 = scmp.eq.s32.totalorder %s27, 0
      %p222 = por %p220, %p221
      %s223 = ssub.s32 %s21, %s28
      %p224 = scmp.eq.s32.totalorder %s223, 0
      %s226 = sadd.s32 %s225, 1
      %s227 = scalar_select %p224, %s225, %s226
      %p230 = pneg %p224
      %p231 = scmp.eq.s32.totalorder %s21, 1
      %p232 = por %p230, %p231
      %p233 = scmp.ne.s32.totalorder %s225, %s228
      %p234 = scmp.eq.s32.totalorder %s21, 0
      %p235 = por %p233, %p234
      %p236 = scmp.ne.s32.totalorder %s225, %s228
      %p237 = scmp.eq.s32.totalorder %s26, 1
      %p238 = por %p236, %p237
      %p239 = scmp.ne.s32.totalorder %s228, %s229
      %p240 = scmp.eq.s32.totalorder %s26, 0
      %p241 = por %p239, %p240
      %p242 = scmp.ne.s32.totalorder %s228, %s229
      %p243 = scmp.eq.s32.totalorder %s27, 1
      %p244 = por %p242, %p243
      %p246 = scmp.ne.s32.totalorder %s229, %s245
      %p247 = scmp.eq.s32.totalorder %s27, 0
      %p248 = por %p246, %p247
      %p249 = scmp.le.s32.totalorder 1, %s21
      %p250 = scmp.lt.s32.totalorder %s21, 3
      %p251 = pnand %p249, %p250
      %p252 = pneg %p251
      // Predicated region
      $region9: #{tpu_custom_call.1} parent=5 // pred_check
        _
      $region10: #{tpu_custom_call.1} parent=5 // pred_check_branch
        %254 = sbr.rel (%p251) target = $region12
      $region11: #{tpu_custom_call.1} parent=5 // pred_region
        %s255 = ssub.s32 %s21, 1
        // Predicated region
        $region13: #{tpu_custom_call.1} parent=11 // pred_check
          %p256 = pneg %p68
        $region14: #{tpu_custom_call.1} parent=11 // pred_check_branch
          %258 = sbr.rel (%p256) target = $region16
        $region15: #{tpu_custom_call.1} parent=11 // pred_region
          _
        $region16: #{tpu_custom_call.1} parent=11 // pred_fallthru
          _
        // Predicated region
        $region17: #{tpu_custom_call.1} parent=11 // pred_check
          %p259 = pneg %p89
        $region18: #{tpu_custom_call.1} parent=11 // pred_check_branch
          %261 = sbr.rel (%p259) target = $region20
        $region19: #{tpu_custom_call.1} parent=11 // pred_region
          _
        $region20: #{tpu_custom_call.1} parent=11 // pred_fallthru
          _
        // Predicated region
        $region21: #{tpu_custom_call.1} parent=11 // pred_check
          %p262 = pneg %p110
        $region22: #{tpu_custom_call.1} parent=11 // pred_check_branch
          %264 = sbr.rel (%p262) target = $region24
        $region23: #{tpu_custom_call.1} parent=11 // pred_region
          _
        $region24: #{tpu_custom_call.1} parent=11 // pred_fallthru
          _
        // Predicated region
        $region25: #{tpu_custom_call.1} parent=11 // pred_check
          %p265 = pneg %p131
        $region26: #{tpu_custom_call.1} parent=11 // pred_check_branch
          %267 = sbr.rel (%p265) target = $region28
        $region27: #{tpu_custom_call.1} parent=11 // pred_region
          _
        $region28: #{tpu_custom_call.1} parent=11 // pred_fallthru
          _
        // Predicated region
        $region29: #{tpu_custom_call.1} parent=11 // pred_check
          %p268 = pneg %p152
        $region30: #{tpu_custom_call.1} parent=11 // pred_check_branch
          %270 = sbr.rel (%p268) target = $region32
        $region31: #{tpu_custom_call.1} parent=11 // pred_region
          _
        $region32: #{tpu_custom_call.1} parent=11 // pred_fallthru
          _
        // Predicated region
        $region33: #{tpu_custom_call.1} parent=11 // pred_check
          %p271 = pneg %p173
        $region34: #{tpu_custom_call.1} parent=11 // pred_check_branch
          %273 = sbr.rel (%p271) target = $region36
        $region35: #{tpu_custom_call.1} parent=11 // pred_region
          _
        $region36: #{tpu_custom_call.1} parent=11 // pred_fallthru
          _
        // Predicated region
        $region37: #{tpu_custom_call.1} parent=11 // pred_check
          %p274 = pneg %p194
        $region38: #{tpu_custom_call.1} parent=11 // pred_check_branch
          %276 = sbr.rel (%p274) target = $region40
        $region39: #{tpu_custom_call.1} parent=11 // pred_region
          _
        $region40: #{tpu_custom_call.1} parent=11 // pred_fallthru
          _
        // Predicated region
        $region41: #{tpu_custom_call.1} parent=11 // pred_check
          %p277 = pneg %p215
        $region42: #{tpu_custom_call.1} parent=11 // pred_check_branch
          %279 = sbr.rel (%p277) target = $region44
        $region43: #{tpu_custom_call.1} parent=11 // pred_region
          _
        $region44: #{tpu_custom_call.1} parent=11 // pred_fallthru
          _
      $region12: #{tpu_custom_call.1} parent=5 // pred_fallthru
        _
      %p280 = scmp.lt.s32.totalorder %s21, 2
      // Predicated region
      $region45: #{tpu_custom_call.1} parent=5 // pred_check
        %p281 = pneg %p280
      $region46: #{tpu_custom_call.1} parent=5 // pred_check_branch
        %283 = sbr.rel (%p281) target = $region48
      $region47: #{tpu_custom_call.1} parent=5 // pred_region
        // Predicated region
        $region49: #{tpu_custom_call.1} parent=47 // pred_check
          %p284 = pneg %p41
        $region50: #{tpu_custom_call.1} parent=47 // pred_check_branch
          %286 = sbr.rel (%p284) target = $region52
        $region51: #{tpu_custom_call.1} parent=47 // pred_region
          %s287 = sand.u32 %s31, 1
          %s288 = scalar_lea.sflag [#allocation3], %s287
          %s289 = sand.u32 %s31, 1
          %s290 = smul.addr %s289, 896
          %s291 = scalar_lea.vmem [#allocation2], %s290
          %s292 = smul.u32 16, %s21
          %s294 = ssub.s32 14336, 14336
          %295 = vsyncadd %s288, %s294
          %s296 = smul.addr %s292, 7
          %s297 = smul.addr %s296, 128
          %s298 = scalar_lea.hbm %s0, %s297
          %s299 = sshll.u32 %s291, 4
          %s300 = int_to_ptr.vmem [resolvable:$true] %s299
          %305 = dma.hbm_to_vmem [thread:$0]  %s298, 14336, %s300, %s288, 896, 896, 56
        $region52: #{tpu_custom_call.1} parent=47 // pred_fallthru
          _
      $region48: #{tpu_custom_call.1} parent=5 // pred_fallthru
        _
      %p306 = scmp.le.s32.totalorder 1, %s21
      %p307 = scmp.lt.s32.totalorder %s21, 3
      %p308 = pnand %p306, %p307
      %p309 = pneg %p308
      // Predicated region
      $region53: #{tpu_custom_call.1} parent=5 // pred_check
        _
      $region54: #{tpu_custom_call.1} parent=5 // pred_check_branch
        %311 = sbr.rel (%p308) target = $region56
      $region55: #{tpu_custom_call.1} parent=5 // pred_region
        %s312 = ssub.s32 %s21, 1
        %s313 = sand.u32 %s34, 1
        %s314 = scalar_lea.sflag [#allocation3], %s313
        %s315 = sand.u32 %s34, 1
        %s316 = smul.addr %s315, 896
        %s317 = scalar_lea.vmem [#allocation2], %s316
        // Predicated region
        $region57: #{tpu_custom_call.1} parent=55 // pred_check
          %p318 = pneg %p47
        $region58: #{tpu_custom_call.1} parent=55 // pred_check_branch
          %320 = sbr.rel (%p318) target = $region60
        $region59: #{tpu_custom_call.1} parent=55 // pred_region
          %321 = dma.done %s314, 14336
        $region60: #{tpu_custom_call.1} parent=55 // pred_fallthru
          _
        %s322 = sand.u32 %s34, 1
        %s323 = scalar_lea.sflag [#allocation3], %s322
        %s324 = sand.u32 %s34, 1
        %s325 = smul.addr %s324, 896
        %s326 = scalar_lea.vmem [#allocation2], %s325
        %p327 = pneg %p47
        %p328 = pneg %p44
        %p329 = pneg %p68
        %p330 = pneg %p65
        %p331 = pneg %p89
        %p332 = pneg %p86
        %p333 = pneg %p110
        %p334 = pneg %p107
        %p335 = pneg %p131
        %p336 = pneg %p128
        %p337 = pneg %p152
        %p338 = pneg %p149
        %p339 = pneg %p173
        %p340 = pneg %p170
        %p341 = pneg %p194
        %p342 = pneg %p191
        %p343 = pneg %p215
        %p344 = pneg %p212
        %p345 = pneg %p241
        %p346 = pneg %p238
        %s347 = sand.u32 %s228, 1
        %s348 = scalar_lea.sflag [#allocation4], %s347
        %s349 = sand.u32 %s228, 1
        %s350 = smul.addr %s349, 128
        %s351 = scalar_lea.vmem [#allocation5], %s350
        %s352 = smul.u32 16, %s26
        %s353 = smul.u32 16, %s26
        %v354 = vld [vmem:[%s317] sm:$0xff]
        %v355 = vld [vmem:[%s317 + $0x8] sm:$0xff]
        %v356 = vld [vmem:[%s317 + $0x10] sm:$0xff]
        %v357 = vld [vmem:[%s317 + $0x18] sm:$0xff]
        %v358 = vld [vmem:[%s317 + $0x20] sm:$0xff]
        %v359 = vld [vmem:[%s317 + $0x28] sm:$0xff]
        %v360 = vld [vmem:[%s317 + $0x30] sm:$0xff]
        %v361 = vld [vmem:[%s317 + $0x38] sm:$0xff]
        %v362 = vld [vmem:[%s317 + $0x40] sm:$0xff]
        %v363 = vld [vmem:[%s317 + $0x48] sm:$0xff]
        %v364 = vld [vmem:[%s317 + $0x50] sm:$0xff]
        %v365 = vld [vmem:[%s317 + $0x58] sm:$0xff]
        %v366 = vld [vmem:[%s317 + $0x60] sm:$0xff]
        %v367 = vld [vmem:[%s317 + $0x68] sm:$0xff]
        %v368 = vld [vmem:[%s317 + $0x70] sm:$0xff]
        %v369 = vld [vmem:[%s317 + $0x78] sm:$0xff]
        %v370 = vld [vmem:[%s317 + $0x80] sm:$0xff]
        %v371 = vld [vmem:[%s317 + $0x88] sm:$0xff]
        %v372 = vld [vmem:[%s317 + $0x90] sm:$0xff]
        %v373 = vld [vmem:[%s317 + $0x98] sm:$0xff]
        %v374 = vld [vmem:[%s317 + $0xa0] sm:$0xff]
        %v375 = vld [vmem:[%s317 + $0xa8] sm:$0xff]
        %v376 = vld [vmem:[%s317 + $0xb0] sm:$0xff]
        %v377 = vld [vmem:[%s317 + $0xb8] sm:$0xff]
        %v378 = vld [vmem:[%s317 + $0xc0] sm:$0xff]
        %v379 = vld [vmem:[%s317 + $0xc8] sm:$0xff]
        %v380 = vld [vmem:[%s317 + $0xd0] sm:$0xff]
        %v381 = vld [vmem:[%s317 + $0xd8] sm:$0xff]
        %v382 = vld [vmem:[%s317 + $0xe0] sm:$0xff]
        %v383 = vld [vmem:[%s317 + $0xe8] sm:$0xff]
        %v384 = vld [vmem:[%s317 + $0xf0] sm:$0xff]
        %v385 = vld [vmem:[%s317 + $0xf8] sm:$0xff]
        %v386 = vld [vmem:[%s317 + $0x100] sm:$0xff]
        %v387 = vld [vmem:[%s317 + $0x108] sm:$0xff]
        %v388 = vld [vmem:[%s317 + $0x110] sm:$0xff]
        %v389 = vld [vmem:[%s317 + $0x118] sm:$0xff]
        %v390 = vld [vmem:[%s317 + $0x120] sm:$0xff]
        %v391 = vld [vmem:[%s317 + $0x128] sm:$0xff]
        %v392 = vld [vmem:[%s317 + $0x130] sm:$0xff]
        %v393 = vld [vmem:[%s317 + $0x138] sm:$0xff]
        %v394 = vld [vmem:[%s317 + $0x140] sm:$0xff]
        %v395 = vld [vmem:[%s317 + $0x148] sm:$0xff]
        %v396 = vld [vmem:[%s317 + $0x150] sm:$0xff]
        %v397 = vld [vmem:[%s317 + $0x158] sm:$0xff]
        %v398 = vld [vmem:[%s317 + $0x160] sm:$0xff]
        %v399 = vld [vmem:[%s317 + $0x168] sm:$0xff]
        %v400 = vld [vmem:[%s317 + $0x170] sm:$0xff]
        %v401 = vld [vmem:[%s317 + $0x178] sm:$0xff]
        %v402 = vld [vmem:[%s317 + $0x180] sm:$0xff]
        %v403 = vld [vmem:[%s317 + $0x188] sm:$0xff]
        %v404 = vld [vmem:[%s317 + $0x190] sm:$0xff]
        %v405 = vld [vmem:[%s317 + $0x198] sm:$0xff]
        %v406 = vld [vmem:[%s317 + $0x1a0] sm:$0xff]
        %v407 = vld [vmem:[%s317 + $0x1a8] sm:$0xff]
        %v408 = vld [vmem:[%s317 + $0x1b0] sm:$0xff]
        %v409 = vld [vmem:[%s317 + $0x1b8] sm:$0xff]
        %v410 = vld [vmem:[%s317 + $0x1c0] sm:$0xff]
        %v411 = vld [vmem:[%s317 + $0x1c8] sm:$0xff]
        %v412 = vld [vmem:[%s317 + $0x1d0] sm:$0xff]
        %v413 = vld [vmem:[%s317 + $0x1d8] sm:$0xff]
        %v414 = vld [vmem:[%s317 + $0x1e0] sm:$0xff]
        %v415 = vld [vmem:[%s317 + $0x1e8] sm:$0xff]
        %v416 = vld [vmem:[%s317 + $0x1f0] sm:$0xff]
        %v417 = vld [vmem:[%s317 + $0x1f8] sm:$0xff]
        %v418 = vld [vmem:[%s317 + $0x200] sm:$0xff]
        %v419 = vld [vmem:[%s317 + $0x208] sm:$0xff]
        %v420 = vld [vmem:[%s317 + $0x210] sm:$0xff]
        %v421 = vld [vmem:[%s317 + $0x218] sm:$0xff]
        %v422 = vld [vmem:[%s317 + $0x220] sm:$0xff]
        %v423 = vld [vmem:[%s317 + $0x228] sm:$0xff]
        %v424 = vld [vmem:[%s317 + $0x230] sm:$0xff]
        %v425 = vld [vmem:[%s317 + $0x238] sm:$0xff]
        %v426 = vld [vmem:[%s317 + $0x240] sm:$0xff]
        %v427 = vld [vmem:[%s317 + $0x248] sm:$0xff]
        %v428 = vld [vmem:[%s317 + $0x250] sm:$0xff]
        %v429 = vld [vmem:[%s317 + $0x258] sm:$0xff]
        %v430 = vld [vmem:[%s317 + $0x260] sm:$0xff]
        %v431 = vld [vmem:[%s317 + $0x268] sm:$0xff]
        %v432 = vld [vmem:[%s317 + $0x270] sm:$0xff]
        %v433 = vld [vmem:[%s317 + $0x278] sm:$0xff]
        %v434 = vld [vmem:[%s317 + $0x280] sm:$0xff]
        %v435 = vld [vmem:[%s317 + $0x288] sm:$0xff]
        %v436 = vld [vmem:[%s317 + $0x290] sm:$0xff]
        %v437 = vld [vmem:[%s317 + $0x298] sm:$0xff]
        %v438 = vld [vmem:[%s317 + $0x2a0] sm:$0xff]
        %v439 = vld [vmem:[%s317 + $0x2a8] sm:$0xff]
        %v440 = vld [vmem:[%s317 + $0x2b0] sm:$0xff]
        %v441 = vld [vmem:[%s317 + $0x2b8] sm:$0xff]
        %v442 = vld [vmem:[%s317 + $0x2c0] sm:$0xff]
        %v443 = vld [vmem:[%s317 + $0x2c8] sm:$0xff]
        %v444 = vld [vmem:[%s317 + $0x2d0] sm:$0xff]
        %v445 = vld [vmem:[%s317 + $0x2d8] sm:$0xff]
        %v446 = vld [vmem:[%s317 + $0x2e0] sm:$0xff]
        %v447 = vld [vmem:[%s317 + $0x2e8] sm:$0xff]
        %v448 = vld [vmem:[%s317 + $0x2f0] sm:$0xff]
        %v449 = vld [vmem:[%s317 + $0x2f8] sm:$0xff]
        %v450 = vld [vmem:[%s317 + $0x300] sm:$0xff]
        %v451 = vld [vmem:[%s317 + $0x308] sm:$0xff]
        %v452 = vld [vmem:[%s317 + $0x310] sm:$0xff]
        %v453 = vld [vmem:[%s317 + $0x318] sm:$0xff]
        %v454 = vld [vmem:[%s317 + $0x320] sm:$0xff]
        %v455 = vld [vmem:[%s317 + $0x328] sm:$0xff]
        %v456 = vld [vmem:[%s317 + $0x330] sm:$0xff]
        %v457 = vld [vmem:[%s317 + $0x338] sm:$0xff]
        %v458 = vld [vmem:[%s317 + $0x340] sm:$0xff]
        %v459 = vld [vmem:[%s317 + $0x348] sm:$0xff]
        %v460 = vld [vmem:[%s317 + $0x350] sm:$0xff]
        %v461 = vld [vmem:[%s317 + $0x358] sm:$0xff]
        %v462 = vld [vmem:[%s317 + $0x360] sm:$0xff]
        %v463 = vld [vmem:[%s317 + $0x368] sm:$0xff]
        %v464 = vld [vmem:[%s317 + $0x370] sm:$0xff]
        %v465 = vld [vmem:[%s317 + $0x378] sm:$0xff]
        %v466 = vld [vmem:[%s1] sm:$0xff]
        %v467 = vld [vmem:[%s1 + $0x8] sm:$0xff]
        %v468 = vld [vmem:[%s1 + $0x10] sm:$0xff]
        %v469 = vld [vmem:[%s1 + $0x18] sm:$0xff]
        %v470 = vld [vmem:[%s1 + $0x20] sm:$0xff]
        %v471 = vld [vmem:[%s1 + $0x28] sm:$0xff]
        %v472 = vld [vmem:[%s1 + $0x30] sm:$0xff]
        %v473 = vld [vmem:[%s1 + $0x38] sm:$0xff]
        %v474 = vld [vmem:[%s1 + $0x40] sm:$0xff]
        %v475 = vld [vmem:[%s1 + $0x48] sm:$0xff]
        %v476 = vld [vmem:[%s1 + $0x50] sm:$0xff]
        %v477 = vld [vmem:[%s1 + $0x58] sm:$0xff]
        %v478 = vld [vmem:[%s1 + $0x60] sm:$0xff]
        %v479 = vld [vmem:[%s1 + $0x68] sm:$0xff]
        %v480 = vld [vmem:[%s1 + $0x70] sm:$0xff]
        %v481 = vld [vmem:[%s1 + $0x78] sm:$0xff]
        %v482 = vld [vmem:[%s1 + $0x80] sm:$0xff]
        %v483 = vld [vmem:[%s1 + $0x88] sm:$0xff]
        %v484 = vld [vmem:[%s1 + $0x90] sm:$0xff]
        %v485 = vld [vmem:[%s1 + $0x98] sm:$0xff]
        %v486 = vld [vmem:[%s1 + $0xa0] sm:$0xff]
        %v487 = vld [vmem:[%s1 + $0xa8] sm:$0xff]
        %v488 = vld [vmem:[%s1 + $0xb0] sm:$0xff]
        %v489 = vld [vmem:[%s1 + $0xb8] sm:$0xff]
        %v490 = vld [vmem:[%s1 + $0xc0] sm:$0xff]
        %v491 = vld [vmem:[%s1 + $0xc8] sm:$0xff]
        %v492 = vld [vmem:[%s1 + $0xd0] sm:$0xff]
        %v493 = vld [vmem:[%s1 + $0xd8] sm:$0xff]
        %v494 = vld [vmem:[%s1 + $0xe0] sm:$0xff]
        %v495 = vld [vmem:[%s1 + $0xe8] sm:$0xff]
        %v496 = vld [vmem:[%s1 + $0xf0] sm:$0xff]
        %v497 = vld [vmem:[%s1 + $0xf8] sm:$0xff]
        %v498 = vld [vmem:[%s1 + $0x100] sm:$0xff]
        %v499 = vld [vmem:[%s1 + $0x108] sm:$0xff]
        %v500 = vld [vmem:[%s1 + $0x110] sm:$0xff]
        %v501 = vld [vmem:[%s1 + $0x118] sm:$0xff]
        %v502 = vld [vmem:[%s1 + $0x120] sm:$0xff]
        %v503 = vld [vmem:[%s1 + $0x128] sm:$0xff]
        %v504 = vld [vmem:[%s1 + $0x130] sm:$0xff]
        %v505 = vld [vmem:[%s1 + $0x138] sm:$0xff]
        %v506 = vld [vmem:[%s1 + $0x140] sm:$0xff]
        %v507 = vld [vmem:[%s1 + $0x148] sm:$0xff]
        %v508 = vld [vmem:[%s1 + $0x150] sm:$0xff]
        %v509 = vld [vmem:[%s1 + $0x158] sm:$0xff]
        %v510 = vld [vmem:[%s1 + $0x160] sm:$0xff]
        %v511 = vld [vmem:[%s1 + $0x168] sm:$0xff]
        %v512 = vld [vmem:[%s1 + $0x170] sm:$0xff]
        %v513 = vld [vmem:[%s1 + $0x178] sm:$0xff]
        %v514 = vld [vmem:[%s1 + $0x180] sm:$0xff]
        %v515 = vld [vmem:[%s1 + $0x188] sm:$0xff]
        %v516 = vld [vmem:[%s1 + $0x190] sm:$0xff]
        %v517 = vld [vmem:[%s1 + $0x198] sm:$0xff]
        %v518 = vld [vmem:[%s1 + $0x1a0] sm:$0xff]
        %v519 = vld [vmem:[%s1 + $0x1a8] sm:$0xff]
        %v520 = vld [vmem:[%s1 + $0x1b0] sm:$0xff]
        %v521 = vld [vmem:[%s1 + $0x1b8] sm:$0xff]
        %v522 = vld [vmem:[%s1 + $0x1c0] sm:$0xff]
        %v523 = vld [vmem:[%s1 + $0x1c8] sm:$0xff]
        %v524 = vld [vmem:[%s1 + $0x1d0] sm:$0xff]
        %v525 = vld [vmem:[%s1 + $0x1d8] sm:$0xff]
        %v526 = vld [vmem:[%s1 + $0x1e0] sm:$0xff]
        %v527 = vld [vmem:[%s1 + $0x1e8] sm:$0xff]
        %v528 = vld [vmem:[%s1 + $0x1f0] sm:$0xff]
        %v529 = vld [vmem:[%s1 + $0x1f8] sm:$0xff]
        %v530 = vld [vmem:[%s1 + $0x200] sm:$0xff]
        %v531 = vld [vmem:[%s1 + $0x208] sm:$0xff]
        %v532 = vld [vmem:[%s1 + $0x210] sm:$0xff]
        %v533 = vld [vmem:[%s1 + $0x218] sm:$0xff]
        %v534 = vld [vmem:[%s1 + $0x220] sm:$0xff]
        %v535 = vld [vmem:[%s1 + $0x228] sm:$0xff]
        %v536 = vld [vmem:[%s1 + $0x230] sm:$0xff]
        %v537 = vld [vmem:[%s1 + $0x238] sm:$0xff]
        %v538 = vld [vmem:[%s1 + $0x240] sm:$0xff]
        %v539 = vld [vmem:[%s1 + $0x248] sm:$0xff]
        %v540 = vld [vmem:[%s1 + $0x250] sm:$0xff]
        %v541 = vld [vmem:[%s1 + $0x258] sm:$0xff]
        %v542 = vld [vmem:[%s1 + $0x260] sm:$0xff]
        %v543 = vld [vmem:[%s1 + $0x268] sm:$0xff]
        %v544 = vld [vmem:[%s1 + $0x270] sm:$0xff]
        %v545 = vld [vmem:[%s1 + $0x278] sm:$0xff]
        %v546 = vld [vmem:[%s1 + $0x280] sm:$0xff]
        %v547 = vld [vmem:[%s1 + $0x288] sm:$0xff]
        %v548 = vld [vmem:[%s1 + $0x290] sm:$0xff]
        %v549 = vld [vmem:[%s1 + $0x298] sm:$0xff]
        %v550 = vld [vmem:[%s1 + $0x2a0] sm:$0xff]
        %v551 = vld [vmem:[%s1 + $0x2a8] sm:$0xff]
        %v552 = vld [vmem:[%s1 + $0x2b0] sm:$0xff]
        %v553 = vld [vmem:[%s1 + $0x2b8] sm:$0xff]
        %v554 = vld [vmem:[%s1 + $0x2c0] sm:$0xff]
        %v555 = vld [vmem:[%s1 + $0x2c8] sm:$0xff]
        %v556 = vld [vmem:[%s1 + $0x2d0] sm:$0xff]
        %v557 = vld [vmem:[%s1 + $0x2d8] sm:$0xff]
        %v558 = vld [vmem:[%s1 + $0x2e0] sm:$0xff]
        %v559 = vld [vmem:[%s1 + $0x2e8] sm:$0xff]
        %v560 = vld [vmem:[%s1 + $0x2f0] sm:$0xff]
        %v561 = vld [vmem:[%s1 + $0x2f8] sm:$0xff]
        %v562 = vld [vmem:[%s1 + $0x300] sm:$0xff]
        %v563 = vld [vmem:[%s1 + $0x308] sm:$0xff]
        %v564 = vld [vmem:[%s1 + $0x310] sm:$0xff]
        %v565 = vld [vmem:[%s1 + $0x318] sm:$0xff]
        %v566 = vld [vmem:[%s1 + $0x320] sm:$0xff]
        %v567 = vld [vmem:[%s1 + $0x328] sm:$0xff]
        %v568 = vld [vmem:[%s1 + $0x330] sm:$0xff]
        %v569 = vld [vmem:[%s1 + $0x338] sm:$0xff]
        %v570 = vld [vmem:[%s1 + $0x340] sm:$0xff]
        %v571 = vld [vmem:[%s1 + $0x348] sm:$0xff]
        %v572 = vld [vmem:[%s1 + $0x350] sm:$0xff]
        %v573 = vld [vmem:[%s1 + $0x358] sm:$0xff]
        %v574 = vld [vmem:[%s1 + $0x360] sm:$0xff]
        %v575 = vld [vmem:[%s1 + $0x368] sm:$0xff]
        %v576 = vld [vmem:[%s1 + $0x370] sm:$0xff]
        %v577 = vld [vmem:[%s1 + $0x378] sm:$0xff]
        %v578 = vld [vmem:[%s2] sm:$0x1]
        %v580 = vlaneseq
        %v581 = vshrl.u32 %v580, 7
        %v582 = vsub.s32 0, %v581
        %v583 = vrot.slane %v578, %v582
        %585 = vmatprep.subr.mxu0 0.0
        %586 = vmatpush1.msra.mxu0 %v481
        %587 = vmatprep.subr.mxu0 0.0
        %588 = vmatpush1.msra.mxu0 %v480
        %589 = vmatprep.subr.mxu0 0.0
        %590 = vmatpush1.msra.mxu0 %v479
        %591 = vmatprep.subr.mxu0 0.0
        %592 = vmatpush1.msra.mxu0 %v478
        %593 = vmatprep.subr.mxu0 0.0
        %594 = vmatpush1.msra.mxu0 %v477
        %595 = vmatprep.subr.mxu0 0.0
        %596 = vmatpush1.msra.mxu0 %v476
        %597 = vmatprep.subr.mxu0 0.0
        %598 = vmatpush1.msra.mxu0 %v475
        %599 = vmatprep.subr.mxu0 0.0
        %600 = vmatpush1.msra.mxu0 %v474
        %601 = vmatprep.subr.mxu0 0.0
        %602 = vmatpush1.msra.mxu0 %v473
        %603 = vmatprep.subr.mxu0 0.0
        %604 = vmatpush1.msra.mxu0 %v472
        %605 = vmatprep.subr.mxu0 0.0
        %606 = vmatpush1.msra.mxu0 %v471
        %607 = vmatprep.subr.mxu0 0.0
        %608 = vmatpush1.msra.mxu0 %v470
        %609 = vmatprep.subr.mxu0 0.0
        %610 = vmatpush1.msra.mxu0 %v469
        %611 = vmatprep.subr.mxu0 0.0
        %612 = vmatpush1.msra.mxu0 %v468
        %613 = vmatprep.subr.mxu0 0.0
        %614 = vmatpush1.msra.mxu0 %v467
        %615 = vmatprep.subr.mxu0 0.0
        %616 = vmatpush1.msra.mxu0 %v466
        %617 = vmatprep.subr.mxu0 0.0
        %618 = vmatpush2.msra.mxu0 %v497
        %619 = vmatprep.subr.mxu0 0.0
        %620 = vmatpush2.msra.mxu0 %v496
        %621 = vmatprep.subr.mxu0 0.0
        %622 = vmatpush2.msra.mxu0 %v495
        %623 = vmatprep.subr.mxu0 0.0
        %624 = vmatpush2.msra.mxu0 %v494
        %625 = vmatprep.subr.mxu0 0.0
        %626 = vmatpush2.msra.mxu0 %v493
        %627 = vmatprep.subr.mxu0 0.0
        %628 = vmatpush2.msra.mxu0 %v492
        %629 = vmatprep.subr.mxu0 0.0
        %630 = vmatpush2.msra.mxu0 %v491
        %631 = vmatprep.subr.mxu0 0.0
        %632 = vmatpush2.msra.mxu0 %v490
        %633 = vmatprep.subr.mxu0 0.0
        %634 = vmatpush2.msra.mxu0 %v489
        %635 = vmatprep.subr.mxu0 0.0
        %636 = vmatpush2.msra.mxu0 %v488
        %637 = vmatprep.subr.mxu0 0.0
        %638 = vmatpush2.msra.mxu0 %v487
        %639 = vmatprep.subr.mxu0 0.0
        %640 = vmatpush2.msra.mxu0 %v486
        %641 = vmatprep.subr.mxu0 0.0
        %642 = vmatpush2.msra.mxu0 %v485
        %643 = vmatprep.subr.mxu0 0.0
        %644 = vmatpush2.msra.mxu0 %v484
        %645 = vmatprep.subr.mxu0 0.0
        %646 = vmatpush2.msra.mxu0 %v483
        %647 = vmatprep.subr.mxu0 0.0
        %648 = vmatpush2.msra.mxu0 %v482
        %649 = vmatprep.mubr.f32.mxu0 %v355
        %650 = vmatmul.mubr.f32.gmra.mxu0 %v354
        %v651 = vpop.f32.mrf.mxu0
        %v652 = vadd.f32 %v583, %v651
        %v653 = vpop.f32.mrf.mxu0
        %654 = vmatprep.mubr.f32.mxu0 %v362
        %655 = vmatmul.mubr.f32.gmra.mxu0 %v361
        %v656 = vpop.f32.mrf.mxu0
        %v657 = vadd.f32 %v583, %v656
        %v658 = vpop.f32.mrf.mxu0
        %659 = vmatprep.mubr.f32.mxu0 %v369
        %660 = vmatmul.mubr.f32.gmra.mxu0 %v368
        %v661 = vpop.f32.mrf.mxu0
        %v662 = vadd.f32 %v583, %v661
        %v663 = vpop.f32.mrf.mxu0
        %664 = vmatprep.mubr.f32.mxu0 %v376
        %665 = vmatmul.mubr.f32.gmra.mxu0 %v375
        %v666 = vpop.f32.mrf.mxu0
        %v667 = vadd.f32 %v583, %v666
        %v668 = vpop.f32.mrf.mxu0
        %669 = vmatprep.mubr.f32.mxu0 %v383
        %670 = vmatmul.mubr.f32.gmra.mxu0 %v382
        %v671 = vpop.f32.mrf.mxu0
        %v672 = vadd.f32 %v583, %v671
        %v673 = vpop.f32.mrf.mxu0
        %674 = vmatprep.mubr.f32.mxu0 %v390
        %675 = vmatmul.mubr.f32.gmra.mxu0 %v389
        %v676 = vpop.f32.mrf.mxu0
        %v677 = vadd.f32 %v583, %v676
        %v678 = vpop.f32.mrf.mxu0
        %679 = vmatprep.mubr.f32.mxu0 %v397
        %680 = vmatmul.mubr.f32.gmra.mxu0 %v396
        %v681 = vpop.f32.mrf.mxu0
        %v682 = vadd.f32 %v583, %v681
        %v683 = vpop.f32.mrf.mxu0
        %684 = vmatprep.mubr.f32.mxu0 %v404
        %685 = vmatmul.mubr.f32.gmra.mxu0 %v403
        %v686 = vpop.f32.mrf.mxu0
        %v687 = vadd.f32 %v583, %v686
        %v688 = vpop.f32.mrf.mxu0
        %689 = vmatprep.mubr.f32.mxu0 %v411
        %690 = vmatmul.mubr.f32.gmra.mxu0 %v410
        %v691 = vpop.f32.mrf.mxu0
        %v692 = vadd.f32 %v583, %v691
        %v693 = vpop.f32.mrf.mxu0
        %694 = vmatprep.mubr.f32.mxu0 %v418
        %695 = vmatmul.mubr.f32.gmra.mxu0 %v417
        %v696 = vpop.f32.mrf.mxu0
        %v697 = vadd.f32 %v583, %v696
        %v698 = vpop.f32.mrf.mxu0
        %699 = vmatprep.mubr.f32.mxu0 %v425
        %700 = vmatmul.mubr.f32.gmra.mxu0 %v424
        %v701 = vpop.f32.mrf.mxu0
        %v702 = vadd.f32 %v583, %v701
        %v703 = vpop.f32.mrf.mxu0
        %704 = vmatprep.mubr.f32.mxu0 %v432
        %705 = vmatmul.mubr.f32.gmra.mxu0 %v431
        %v706 = vpop.f32.mrf.mxu0
        %v707 = vadd.f32 %v583, %v706
        %v708 = vpop.f32.mrf.mxu0
        %709 = vmatprep.mubr.f32.mxu0 %v439
        %710 = vmatmul.mubr.f32.gmra.mxu0 %v438
        %v711 = vpop.f32.mrf.mxu0
        %v712 = vadd.f32 %v583, %v711
        %v713 = vpop.f32.mrf.mxu0
        %714 = vmatprep.mubr.f32.mxu0 %v446
        %715 = vmatmul.mubr.f32.gmra.mxu0 %v445
        %v716 = vpop.f32.mrf.mxu0
        %v717 = vadd.f32 %v583, %v716
        %v718 = vpop.f32.mrf.mxu0
        %719 = vmatprep.mubr.f32.mxu0 %v453
        %720 = vmatmul.mubr.f32.gmra.mxu0 %v452
        %v721 = vpop.f32.mrf.mxu0
        %v722 = vadd.f32 %v583, %v721
        %v723 = vpop.f32.mrf.mxu0
        %724 = vmatprep.mubr.f32.mxu0 %v460
        %725 = vmatmul.mubr.f32.gmra.mxu0 %v459
        %v726 = vpop.f32.mrf.mxu0
        %v727 = vadd.f32 %v583, %v726
        %v728 = vpop.f32.mrf.mxu0
        %729 = vdwg.mxu0
        %730 = vmatprep.subr.mxu0 0.0
        %731 = vmatpush1.msra.mxu0 %v513
        %732 = vmatprep.subr.mxu0 0.0
        %733 = vmatpush1.msra.mxu0 %v512
        %734 = vmatprep.subr.mxu0 0.0
        %735 = vmatpush1.msra.mxu0 %v511
        %736 = vmatprep.subr.mxu0 0.0
        %737 = vmatpush1.msra.mxu0 %v510
        %738 = vmatprep.subr.mxu0 0.0
        %739 = vmatpush1.msra.mxu0 %v509
        %740 = vmatprep.subr.mxu0 0.0
        %741 = vmatpush1.msra.mxu0 %v508
        %742 = vmatprep.subr.mxu0 0.0
        %743 = vmatpush1.msra.mxu0 %v507
        %744 = vmatprep.subr.mxu0 0.0
        %745 = vmatpush1.msra.mxu0 %v506
        %746 = vmatprep.subr.mxu0 0.0
        %747 = vmatpush1.msra.mxu0 %v505
        %748 = vmatprep.subr.mxu0 0.0
        %749 = vmatpush1.msra.mxu0 %v504
        %750 = vmatprep.subr.mxu0 0.0
        %751 = vmatpush1.msra.mxu0 %v503
        %752 = vmatprep.subr.mxu0 0.0
        %753 = vmatpush1.msra.mxu0 %v502
        %754 = vmatprep.subr.mxu0 0.0
        %755 = vmatpush1.msra.mxu0 %v501
        %756 = vmatprep.subr.mxu0 0.0
        %757 = vmatpush1.msra.mxu0 %v500
        %758 = vmatprep.subr.mxu0 0.0
        %759 = vmatpush1.msra.mxu0 %v499
        %760 = vmatprep.subr.mxu0 0.0
        %761 = vmatpush1.msra.mxu0 %v498
        %762 = vmatprep.subr.mxu0 0.0
        %763 = vmatpush2.msra.mxu0 %v529
        %764 = vmatprep.subr.mxu0 0.0
        %765 = vmatpush2.msra.mxu0 %v528
        %766 = vmatprep.subr.mxu0 0.0
        %767 = vmatpush2.msra.mxu0 %v527
        %768 = vmatprep.subr.mxu0 0.0
        %769 = vmatpush2.msra.mxu0 %v526
        %770 = vmatprep.subr.mxu0 0.0
        %771 = vmatpush2.msra.mxu0 %v525
        %772 = vmatprep.subr.mxu0 0.0
        %773 = vmatpush2.msra.mxu0 %v524
        %774 = vmatprep.subr.mxu0 0.0
        %775 = vmatpush2.msra.mxu0 %v523
        %776 = vmatprep.subr.mxu0 0.0
        %777 = vmatpush2.msra.mxu0 %v522
        %778 = vmatprep.subr.mxu0 0.0
        %779 = vmatpush2.msra.mxu0 %v521
        %780 = vmatprep.subr.mxu0 0.0
        %781 = vmatpush2.msra.mxu0 %v520
        %782 = vmatprep.subr.mxu0 0.0
        %783 = vmatpush2.msra.mxu0 %v519
        %784 = vmatprep.subr.mxu0 0.0
        %785 = vmatpush2.msra.mxu0 %v518
        %786 = vmatprep.subr.mxu0 0.0
        %787 = vmatpush2.msra.mxu0 %v517
        %788 = vmatprep.subr.mxu0 0.0
        %789 = vmatpush2.msra.mxu0 %v516
        %790 = vmatprep.subr.mxu0 0.0
        %791 = vmatpush2.msra.mxu0 %v515
        %792 = vmatprep.subr.mxu0 0.0
        %793 = vmatpush2.msra.mxu0 %v514
        %794 = vmatprep.mubr.f32.mxu0 %v357
        %795 = vmatmul.mubr.f32.gmra.mxu0 %v356
        %v796 = vpop.f32.mrf.mxu0
        %v797 = vadd.f32 %v652, %v796
        %v798 = vpop.f32.mrf.mxu0
        %799 = vmatprep.mubr.f32.mxu0 %v364
        %800 = vmatmul.mubr.f32.gmra.mxu0 %v363
        %v801 = vpop.f32.mrf.mxu0
        %v802 = vadd.f32 %v657, %v801
        %v803 = vpop.f32.mrf.mxu0
        %804 = vmatprep.mubr.f32.mxu0 %v371
        %805 = vmatmul.mubr.f32.gmra.mxu0 %v370
        %v806 = vpop.f32.mrf.mxu0
        %v807 = vadd.f32 %v662, %v806
        %v808 = vpop.f32.mrf.mxu0
        %809 = vmatprep.mubr.f32.mxu0 %v378
        %810 = vmatmul.mubr.f32.gmra.mxu0 %v377
        %v811 = vpop.f32.mrf.mxu0
        %v812 = vadd.f32 %v667, %v811
        %v813 = vpop.f32.mrf.mxu0
        %814 = vmatprep.mubr.f32.mxu0 %v385
        %815 = vmatmul.mubr.f32.gmra.mxu0 %v384
        %v816 = vpop.f32.mrf.mxu0
        %v817 = vadd.f32 %v672, %v816
        %v818 = vpop.f32.mrf.mxu0
        %819 = vmatprep.mubr.f32.mxu0 %v392
        %820 = vmatmul.mubr.f32.gmra.mxu0 %v391
        %v821 = vpop.f32.mrf.mxu0
        %v822 = vadd.f32 %v677, %v821
        %v823 = vpop.f32.mrf.mxu0
        %824 = vmatprep.mubr.f32.mxu0 %v399
        %825 = vmatmul.mubr.f32.gmra.mxu0 %v398
        %v826 = vpop.f32.mrf.mxu0
        %v827 = vadd.f32 %v682, %v826
        %v828 = vpop.f32.mrf.mxu0
        %829 = vmatprep.mubr.f32.mxu0 %v406
        %830 = vmatmul.mubr.f32.gmra.mxu0 %v405
        %v831 = vpop.f32.mrf.mxu0
        %v832 = vadd.f32 %v687, %v831
        %v833 = vpop.f32.mrf.mxu0
        %834 = vmatprep.mubr.f32.mxu0 %v413
        %835 = vmatmul.mubr.f32.gmra.mxu0 %v412
        %v836 = vpop.f32.mrf.mxu0
        %v837 = vadd.f32 %v692, %v836
        %v838 = vpop.f32.mrf.mxu0
        %839 = vmatprep.mubr.f32.mxu0 %v420
        %840 = vmatmul.mubr.f32.gmra.mxu0 %v419
        %v841 = vpop.f32.mrf.mxu0
        %v842 = vadd.f32 %v697, %v841
        %v843 = vpop.f32.mrf.mxu0
        %844 = vmatprep.mubr.f32.mxu0 %v427
        %845 = vmatmul.mubr.f32.gmra.mxu0 %v426
        %v846 = vpop.f32.mrf.mxu0
        %v847 = vadd.f32 %v702, %v846
        %v848 = vpop.f32.mrf.mxu0
        %849 = vmatprep.mubr.f32.mxu0 %v434
        %850 = vmatmul.mubr.f32.gmra.mxu0 %v433
        %v851 = vpop.f32.mrf.mxu0
        %v852 = vadd.f32 %v707, %v851
        %v853 = vpop.f32.mrf.mxu0
        %854 = vmatprep.mubr.f32.mxu0 %v441
        %855 = vmatmul.mubr.f32.gmra.mxu0 %v440
        %v856 = vpop.f32.mrf.mxu0
        %v857 = vadd.f32 %v712, %v856
        %v858 = vpop.f32.mrf.mxu0
        %859 = vmatprep.mubr.f32.mxu0 %v448
        %860 = vmatmul.mubr.f32.gmra.mxu0 %v447
        %v861 = vpop.f32.mrf.mxu0
        %v862 = vadd.f32 %v717, %v861
        %v863 = vpop.f32.mrf.mxu0
        %864 = vmatprep.mubr.f32.mxu0 %v455
        %865 = vmatmul.mubr.f32.gmra.mxu0 %v454
        %v866 = vpop.f32.mrf.mxu0
        %v867 = vadd.f32 %v722, %v866
        %v868 = vpop.f32.mrf.mxu0
        %869 = vmatprep.mubr.f32.mxu0 %v462
        %870 = vmatmul.mubr.f32.gmra.mxu0 %v461
        %v871 = vpop.f32.mrf.mxu0
        %v872 = vadd.f32 %v727, %v871
        %v873 = vpop.f32.mrf.mxu0
        %874 = vdwg.mxu0
        %875 = vmatprep.subr.mxu0 0.0
        %876 = vmatpush1.msra.mxu0 %v545
        %877 = vmatprep.subr.mxu0 0.0
        %878 = vmatpush1.msra.mxu0 %v544
        %879 = vmatprep.subr.mxu0 0.0
        %880 = vmatpush1.msra.mxu0 %v543
        %881 = vmatprep.subr.mxu0 0.0
        %882 = vmatpush1.msra.mxu0 %v542
        %883 = vmatprep.subr.mxu0 0.0
        %884 = vmatpush1.msra.mxu0 %v541
        %885 = vmatprep.subr.mxu0 0.0
        %886 = vmatpush1.msra.mxu0 %v540
        %887 = vmatprep.subr.mxu0 0.0
        %888 = vmatpush1.msra.mxu0 %v539
        %889 = vmatprep.subr.mxu0 0.0
        %890 = vmatpush1.msra.mxu0 %v538
        %891 = vmatprep.subr.mxu0 0.0
        %892 = vmatpush1.msra.mxu0 %v537
        %893 = vmatprep.subr.mxu0 0.0
        %894 = vmatpush1.msra.mxu0 %v536
        %895 = vmatprep.subr.mxu0 0.0
        %896 = vmatpush1.msra.mxu0 %v535
        %897 = vmatprep.subr.mxu0 0.0
        %898 = vmatpush1.msra.mxu0 %v534
        %899 = vmatprep.subr.mxu0 0.0
        %900 = vmatpush1.msra.mxu0 %v533
        %901 = vmatprep.subr.mxu0 0.0
        %902 = vmatpush1.msra.mxu0 %v532
        %903 = vmatprep.subr.mxu0 0.0
        %904 = vmatpush1.msra.mxu0 %v531
        %905 = vmatprep.subr.mxu0 0.0
        %906 = vmatpush1.msra.mxu0 %v530
        %907 = vmatprep.subr.mxu0 0.0
        %908 = vmatpush2.msra.mxu0 %v561
        %909 = vmatprep.subr.mxu0 0.0
        %910 = vmatpush2.msra.mxu0 %v560
        %911 = vmatprep.subr.mxu0 0.0
        %912 = vmatpush2.msra.mxu0 %v559
        %913 = vmatprep.subr.mxu0 0.0
        %914 = vmatpush2.msra.mxu0 %v558
        %915 = vmatprep.subr.mxu0 0.0
        %916 = vmatpush2.msra.mxu0 %v557
        %917 = vmatprep.subr.mxu0 0.0
        %918 = vmatpush2.msra.mxu0 %v556
        %919 = vmatprep.subr.mxu0 0.0
        %920 = vmatpush2.msra.mxu0 %v555
        %921 = vmatprep.subr.mxu0 0.0
        %922 = vmatpush2.msra.mxu0 %v554
        %923 = vmatprep.subr.mxu0 0.0
        %924 = vmatpush2.msra.mxu0 %v553
        %925 = vmatprep.subr.mxu0 0.0
        %926 = vmatpush2.msra.mxu0 %v552
        %927 = vmatprep.subr.mxu0 0.0
        %928 = vmatpush2.msra.mxu0 %v551
        %929 = vmatprep.subr.mxu0 0.0
        %930 = vmatpush2.msra.mxu0 %v550
        %931 = vmatprep.subr.mxu0 0.0
        %932 = vmatpush2.msra.mxu0 %v549
        %933 = vmatprep.subr.mxu0 0.0
        %934 = vmatpush2.msra.mxu0 %v548
        %935 = vmatprep.subr.mxu0 0.0
        %936 = vmatpush2.msra.mxu0 %v547
        %937 = vmatprep.subr.mxu0 0.0
        %938 = vmatpush2.msra.mxu0 %v546
        %939 = vmatprep.mubr.f32.mxu0 %v359
        %940 = vmatmul.mubr.f32.gmra.mxu0 %v358
        %v941 = vpop.f32.mrf.mxu0
        %v942 = vadd.f32 %v797, %v941
        %v943 = vpop.f32.mrf.mxu0
        %944 = vmatprep.mubr.f32.mxu0 %v366
        %945 = vmatmul.mubr.f32.gmra.mxu0 %v365
        %v946 = vpop.f32.mrf.mxu0
        %v947 = vadd.f32 %v802, %v946
        %v948 = vpop.f32.mrf.mxu0
        %949 = vmatprep.mubr.f32.mxu0 %v373
        %950 = vmatmul.mubr.f32.gmra.mxu0 %v372
        %v951 = vpop.f32.mrf.mxu0
        %v952 = vadd.f32 %v807, %v951
        %v953 = vpop.f32.mrf.mxu0
        %954 = vmatprep.mubr.f32.mxu0 %v380
        %955 = vmatmul.mubr.f32.gmra.mxu0 %v379
        %v956 = vpop.f32.mrf.mxu0
        %v957 = vadd.f32 %v812, %v956
        %v958 = vpop.f32.mrf.mxu0
        %959 = vmatprep.mubr.f32.mxu0 %v387
        %960 = vmatmul.mubr.f32.gmra.mxu0 %v386
        %v961 = vpop.f32.mrf.mxu0
        %v962 = vadd.f32 %v817, %v961
        %v963 = vpop.f32.mrf.mxu0
        %964 = vmatprep.mubr.f32.mxu0 %v394
        %965 = vmatmul.mubr.f32.gmra.mxu0 %v393
        %v966 = vpop.f32.mrf.mxu0
        %v967 = vadd.f32 %v822, %v966
        %v968 = vpop.f32.mrf.mxu0
        %969 = vmatprep.mubr.f32.mxu0 %v401
        %970 = vmatmul.mubr.f32.gmra.mxu0 %v400
        %v971 = vpop.f32.mrf.mxu0
        %v972 = vadd.f32 %v827, %v971
        %v973 = vpop.f32.mrf.mxu0
        %974 = vmatprep.mubr.f32.mxu0 %v408
        %975 = vmatmul.mubr.f32.gmra.mxu0 %v407
        %v976 = vpop.f32.mrf.mxu0
        %v977 = vadd.f32 %v832, %v976
        %v978 = vpop.f32.mrf.mxu0
        %979 = vmatprep.mubr.f32.mxu0 %v415
        %980 = vmatmul.mubr.f32.gmra.mxu0 %v414
        %v981 = vpop.f32.mrf.mxu0
        %v982 = vadd.f32 %v837, %v981
        %v983 = vpop.f32.mrf.mxu0
        %984 = vmatprep.mubr.f32.mxu0 %v422
        %985 = vmatmul.mubr.f32.gmra.mxu0 %v421
        %v986 = vpop.f32.mrf.mxu0
        %v987 = vadd.f32 %v842, %v986
        %v988 = vpop.f32.mrf.mxu0
        %989 = vmatprep.mubr.f32.mxu0 %v429
        %990 = vmatmul.mubr.f32.gmra.mxu0 %v428
        %v991 = vpop.f32.mrf.mxu0
        %v992 = vadd.f32 %v847, %v991
        %v993 = vpop.f32.mrf.mxu0
        %994 = vmatprep.mubr.f32.mxu0 %v436
        %995 = vmatmul.mubr.f32.gmra.mxu0 %v435
        %v996 = vpop.f32.mrf.mxu0
        %v997 = vadd.f32 %v852, %v996
        %v998 = vpop.f32.mrf.mxu0
        %999 = vmatprep.mubr.f32.mxu0 %v443
        %1000 = vmatmul.mubr.f32.gmra.mxu0 %v442
        %v1001 = vpop.f32.mrf.mxu0
        %v1002 = vadd.f32 %v857, %v1001
        %v1003 = vpop.f32.mrf.mxu0
        %1004 = vmatprep.mubr.f32.mxu0 %v450
        %1005 = vmatmul.mubr.f32.gmra.mxu0 %v449
        %v1006 = vpop.f32.mrf.mxu0
        %v1007 = vadd.f32 %v862, %v1006
        %v1008 = vpop.f32.mrf.mxu0
        %1009 = vmatprep.mubr.f32.mxu0 %v457
        %1010 = vmatmul.mubr.f32.gmra.mxu0 %v456
        %v1011 = vpop.f32.mrf.mxu0
        %v1012 = vadd.f32 %v867, %v1011
        %v1013 = vpop.f32.mrf.mxu0
        %1014 = vmatprep.mubr.f32.mxu0 %v464
        %1015 = vmatmul.mubr.f32.gmra.mxu0 %v463
        %v1016 = vpop.f32.mrf.mxu0
        %v1017 = vadd.f32 %v872, %v1016
        %v1018 = vpop.f32.mrf.mxu0
        %1019 = vdwg.mxu0
        %1020 = vmatprep.subr.mxu0 0.0
        %1021 = vmatpush1.msra.mxu0 %v577
        %1022 = vmatprep.subr.mxu0 0.0
        %1023 = vmatpush1.msra.mxu0 %v576
        %1024 = vmatprep.subr.mxu0 0.0
        %1025 = vmatpush1.msra.mxu0 %v575
        %1026 = vmatprep.subr.mxu0 0.0
        %1027 = vmatpush1.msra.mxu0 %v574
        %1028 = vmatprep.subr.mxu0 0.0
        %1029 = vmatpush1.msra.mxu0 %v573
        %1030 = vmatprep.subr.mxu0 0.0
        %1031 = vmatpush1.msra.mxu0 %v572
        %1032 = vmatprep.subr.mxu0 0.0
        %1033 = vmatpush1.msra.mxu0 %v571
        %1034 = vmatprep.subr.mxu0 0.0
        %1035 = vmatpush1.msra.mxu0 %v570
        %1036 = vmatprep.subr.mxu0 0.0
        %1037 = vmatpush1.msra.mxu0 %v569
        %1038 = vmatprep.subr.mxu0 0.0
        %1039 = vmatpush1.msra.mxu0 %v568
        %1040 = vmatprep.subr.mxu0 0.0
        %1041 = vmatpush1.msra.mxu0 %v567
        %1042 = vmatprep.subr.mxu0 0.0
        %1043 = vmatpush1.msra.mxu0 %v566
        %1044 = vmatprep.subr.mxu0 0.0
        %1045 = vmatpush1.msra.mxu0 %v565
        %1046 = vmatprep.subr.mxu0 0.0
        %1047 = vmatpush1.msra.mxu0 %v564
        %1048 = vmatprep.subr.mxu0 0.0
        %1049 = vmatpush1.msra.mxu0 %v563
        %1050 = vmatprep.subr.mxu0 0.0
        %1051 = vmatpush1.msra.mxu0 %v562
        %1052 = vmatprep.subr.mxu0 0.0
        %1053 = vmatpush2.msra.mxu0 0.0
        %1054 = vmatprep.subr.mxu0 0.0
        %1055 = vmatpush2.msra.mxu0 0.0
        %1056 = vmatprep.subr.mxu0 0.0
        %1057 = vmatpush2.msra.mxu0 0.0
        %1058 = vmatprep.subr.mxu0 0.0
        %1059 = vmatpush2.msra.mxu0 0.0
        %1060 = vmatprep.subr.mxu0 0.0
        %1061 = vmatpush2.msra.mxu0 0.0
        %1062 = vmatprep.subr.mxu0 0.0
        %1063 = vmatpush2.msra.mxu0 0.0
        %1064 = vmatprep.subr.mxu0 0.0
        %1065 = vmatpush2.msra.mxu0 0.0
        %1066 = vmatprep.subr.mxu0 0.0
        %1067 = vmatpush2.msra.mxu0 0.0
        %1068 = vmatprep.subr.mxu0 0.0
        %1069 = vmatpush2.msra.mxu0 0.0
        %1070 = vmatprep.subr.mxu0 0.0
        %1071 = vmatpush2.msra.mxu0 0.0
        %1072 = vmatprep.subr.mxu0 0.0
        %1073 = vmatpush2.msra.mxu0 0.0
        %1074 = vmatprep.subr.mxu0 0.0
        %1075 = vmatpush2.msra.mxu0 0.0
        %1076 = vmatprep.subr.mxu0 0.0
        %1077 = vmatpush2.msra.mxu0 0.0
        %1078 = vmatprep.subr.mxu0 0.0
        %1079 = vmatpush2.msra.mxu0 0.0
        %1080 = vmatprep.subr.mxu0 0.0
        %1081 = vmatpush2.msra.mxu0 0.0
        %1082 = vmatprep.subr.mxu0 0.0
        %1083 = vmatpush2.msra.mxu0 0.0
        %1084 = vmatprep.mubr.f32.mxu0 0.0
        %1085 = vmatmul.mubr.f32.gmra.mxu0 %v360
        %v1086 = vpop.f32.mrf.mxu0
        %v1087 = vadd.f32 %v942, %v1086
        %v1088 = vpop.f32.mrf.mxu0
        %1089 = vmatprep.mubr.f32.mxu0 0.0
        %1090 = vmatmul.mubr.f32.gmra.mxu0 %v367
        %v1091 = vpop.f32.mrf.mxu0
        %v1092 = vadd.f32 %v947, %v1091
        %v1093 = vpop.f32.mrf.mxu0
        %1094 = vmatprep.mubr.f32.mxu0 0.0
        %1095 = vmatmul.mubr.f32.gmra.mxu0 %v374
        %v1096 = vpop.f32.mrf.mxu0
        %v1097 = vadd.f32 %v952, %v1096
        %v1098 = vpop.f32.mrf.mxu0
        %1099 = vmatprep.mubr.f32.mxu0 0.0
        %1100 = vmatmul.mubr.f32.gmra.mxu0 %v381
        %v1101 = vpop.f32.mrf.mxu0
        %v1102 = vadd.f32 %v957, %v1101
        %v1103 = vpop.f32.mrf.mxu0
        %1104 = vmatprep.mubr.f32.mxu0 0.0
        %1105 = vmatmul.mubr.f32.gmra.mxu0 %v388
        %v1106 = vpop.f32.mrf.mxu0
        %v1107 = vadd.f32 %v962, %v1106
        %v1108 = vpop.f32.mrf.mxu0
        %1109 = vmatprep.mubr.f32.mxu0 0.0
        %1110 = vmatmul.mubr.f32.gmra.mxu0 %v395
        %v1111 = vpop.f32.mrf.mxu0
        %v1112 = vadd.f32 %v967, %v1111
        %v1113 = vpop.f32.mrf.mxu0
        %1114 = vmatprep.mubr.f32.mxu0 0.0
        %1115 = vmatmul.mubr.f32.gmra.mxu0 %v402
        %v1116 = vpop.f32.mrf.mxu0
        %v1117 = vadd.f32 %v972, %v1116
        %v1118 = vpop.f32.mrf.mxu0
        %1119 = vmatprep.mubr.f32.mxu0 0.0
        %1120 = vmatmul.mubr.f32.gmra.mxu0 %v409
        %v1121 = vpop.f32.mrf.mxu0
        %v1122 = vadd.f32 %v977, %v1121
        %v1123 = vpop.f32.mrf.mxu0
        %1124 = vmatprep.mubr.f32.mxu0 0.0
        %1125 = vmatmul.mubr.f32.gmra.mxu0 %v416
        %v1126 = vpop.f32.mrf.mxu0
        %v1127 = vadd.f32 %v982, %v1126
        %v1128 = vpop.f32.mrf.mxu0
        %1129 = vmatprep.mubr.f32.mxu0 0.0
        %1130 = vmatmul.mubr.f32.gmra.mxu0 %v423
        %v1131 = vpop.f32.mrf.mxu0
        %v1132 = vadd.f32 %v987, %v1131
        %v1133 = vpop.f32.mrf.mxu0
        %1134 = vmatprep.mubr.f32.mxu0 0.0
        %1135 = vmatmul.mubr.f32.gmra.mxu0 %v430
        %v1136 = vpop.f32.mrf.mxu0
        %v1137 = vadd.f32 %v992, %v1136
        %v1138 = vpop.f32.mrf.mxu0
        %1139 = vmatprep.mubr.f32.mxu0 0.0
        %1140 = vmatmul.mubr.f32.gmra.mxu0 %v437
        %v1141 = vpop.f32.mrf.mxu0
        %v1142 = vadd.f32 %v997, %v1141
        %v1143 = vpop.f32.mrf.mxu0
        %1144 = vmatprep.mubr.f32.mxu0 0.0
        %1145 = vmatmul.mubr.f32.gmra.mxu0 %v444
        %v1146 = vpop.f32.mrf.mxu0
        %v1147 = vadd.f32 %v1002, %v1146
        %v1148 = vpop.f32.mrf.mxu0
        %1149 = vmatprep.mubr.f32.mxu0 0.0
        %1150 = vmatmul.mubr.f32.gmra.mxu0 %v451
        %v1151 = vpop.f32.mrf.mxu0
        %v1152 = vadd.f32 %v1007, %v1151
        %v1153 = vpop.f32.mrf.mxu0
        %1154 = vmatprep.mubr.f32.mxu0 0.0
        %1155 = vmatmul.mubr.f32.gmra.mxu0 %v458
        %v1156 = vpop.f32.mrf.mxu0
        %v1157 = vadd.f32 %v1012, %v1156
        %v1158 = vpop.f32.mrf.mxu0
        %1159 = vmatprep.mubr.f32.mxu0 0.0
        %1160 = vmatmul.mubr.f32.gmra.mxu0 %v465
        %v1161 = vpop.f32.mrf.mxu0
        %v1162 = vadd.f32 %v1017, %v1161
        %v1163 = vpop.f32.mrf.mxu0
        %1164 = vdwg.mxu0
        %v1165 = vmax.f32 %v1087, 0.0
        %v1166 = vmax.f32 %v1092, 0.0
        %v1167 = vmax.f32 %v1097, 0.0
        %v1168 = vmax.f32 %v1102, 0.0
        %v1169 = vmax.f32 %v1107, 0.0
        %v1170 = vmax.f32 %v1112, 0.0
        %v1171 = vmax.f32 %v1117, 0.0
        %v1172 = vmax.f32 %v1122, 0.0
        %v1173 = vmax.f32 %v1127, 0.0
        %v1174 = vmax.f32 %v1132, 0.0
        %v1175 = vmax.f32 %v1137, 0.0
        %v1176 = vmax.f32 %v1142, 0.0
        %v1177 = vmax.f32 %v1147, 0.0
        %v1178 = vmax.f32 %v1152, 0.0
        %v1179 = vmax.f32 %v1157, 0.0
        %v1180 = vmax.f32 %v1162, 0.0
        %v1181 = vld [vmem:[%s3] sm:$0xff]
        %v1182 = vld [vmem:[%s3 + $0x8] sm:$0xff]
        %v1183 = vld [vmem:[%s3 + $0x10] sm:$0xff]
        %v1184 = vld [vmem:[%s3 + $0x18] sm:$0xff]
        %v1185 = vld [vmem:[%s3 + $0x20] sm:$0xff]
        %v1186 = vld [vmem:[%s3 + $0x28] sm:$0xff]
        %v1187 = vld [vmem:[%s3 + $0x30] sm:$0xff]
        %v1188 = vld [vmem:[%s3 + $0x38] sm:$0xff]
        %v1189 = vld [vmem:[%s4] sm:$0x1]
        %v1191 = vlaneseq
        %v1192 = vshrl.u32 %v1191, 7
        %v1193 = vsub.s32 0, %v1192
        %v1194 = vrot.slane %v1189, %v1193
        %vm1196 = vcmask 523264
        %v1198 = vsel %vm1196, %v1165, 0
        %v1201 = vsel %vm1196, %v1166, 0
        %v1204 = vsel %vm1196, %v1167, 0
        %v1207 = vsel %vm1196, %v1168, 0
        %v1210 = vsel %vm1196, %v1169, 0
        %v1213 = vsel %vm1196, %v1170, 0
        %v1216 = vsel %vm1196, %v1171, 0
        %v1219 = vsel %vm1196, %v1172, 0
        %v1222 = vsel %vm1196, %v1173, 0
        %v1225 = vsel %vm1196, %v1174, 0
        %v1228 = vsel %vm1196, %v1175, 0
        %v1231 = vsel %vm1196, %v1176, 0
        %v1234 = vsel %vm1196, %v1177, 0
        %v1237 = vsel %vm1196, %v1178, 0
        %v1240 = vsel %vm1196, %v1179, 0
        %v1243 = vsel %vm1196, %v1180, 0
        %1245 = vmatprep.subr.mxu0 0.0
        %1246 = vmatpush1.msra.mxu0 0.0
        %1247 = vmatprep.subr.mxu0 0.0
        %1248 = vmatpush1.msra.mxu0 0.0
        %1249 = vmatprep.subr.mxu0 0.0
        %1250 = vmatpush1.msra.mxu0 0.0
        %1251 = vmatprep.subr.mxu0 0.0
        %1252 = vmatpush1.msra.mxu0 0.0
        %1253 = vmatprep.subr.mxu0 0.0
        %1254 = vmatpush1.msra.mxu0 0.0
        %1255 = vmatprep.subr.mxu0 0.0
        %1256 = vmatpush1.msra.mxu0 0.0
        %1257 = vmatprep.subr.mxu0 0.0
        %1258 = vmatpush1.msra.mxu0 0.0
        %1259 = vmatprep.subr.mxu0 0.0
        %1260 = vmatpush1.msra.mxu0 0.0
        %1261 = vmatprep.subr.mxu0 0.0
        %1262 = vmatpush1.msra.mxu0 %v1188
        %1263 = vmatprep.subr.mxu0 0.0
        %1264 = vmatpush1.msra.mxu0 %v1187
        %1265 = vmatprep.subr.mxu0 0.0
        %1266 = vmatpush1.msra.mxu0 %v1186
        %1267 = vmatprep.subr.mxu0 0.0
        %1268 = vmatpush1.msra.mxu0 %v1185
        %1269 = vmatprep.subr.mxu0 0.0
        %1270 = vmatpush1.msra.mxu0 %v1184
        %1271 = vmatprep.subr.mxu0 0.0
        %1272 = vmatpush1.msra.mxu0 %v1183
        %1273 = vmatprep.subr.mxu0 0.0
        %1274 = vmatpush1.msra.mxu0 %v1182
        %1275 = vmatprep.subr.mxu0 0.0
        %1276 = vmatpush1.msra.mxu0 %v1181
        %1277 = vmatprep.subr.mxu0 0.0
        %1278 = vmatpush2.msra.mxu0 0.0
        %1279 = vmatprep.subr.mxu0 0.0
        %1280 = vmatpush2.msra.mxu0 0.0
        %1281 = vmatprep.subr.mxu0 0.0
        %1282 = vmatpush2.msra.mxu0 0.0
        %1283 = vmatprep.subr.mxu0 0.0
        %1284 = vmatpush2.msra.mxu0 0.0
        %1285 = vmatprep.subr.mxu0 0.0
        %1286 = vmatpush2.msra.mxu0 0.0
        %1287 = vmatprep.subr.mxu0 0.0
        %1288 = vmatpush2.msra.mxu0 0.0
        %1289 = vmatprep.subr.mxu0 0.0
        %1290 = vmatpush2.msra.mxu0 0.0
        %1291 = vmatprep.subr.mxu0 0.0
        %1292 = vmatpush2.msra.mxu0 0.0
        %1293 = vmatprep.subr.mxu0 0.0
        %1294 = vmatpush2.msra.mxu0 0.0
        %1295 = vmatprep.subr.mxu0 0.0
        %1296 = vmatpush2.msra.mxu0 0.0
        %1297 = vmatprep.subr.mxu0 0.0
        %1298 = vmatpush2.msra.mxu0 0.0
        %1299 = vmatprep.subr.mxu0 0.0
        %1300 = vmatpush2.msra.mxu0 0.0
        %1301 = vmatprep.subr.mxu0 0.0
        %1302 = vmatpush2.msra.mxu0 0.0
        %1303 = vmatprep.subr.mxu0 0.0
        %1304 = vmatpush2.msra.mxu0 0.0
        %1305 = vmatprep.subr.mxu0 0.0
        %1306 = vmatpush2.msra.mxu0 0.0
        %1307 = vmatprep.subr.mxu0 0.0
        %1308 = vmatpush2.msra.mxu0 0.0
        %1309 = vmatprep.mubr.f32.mxu0 0.0
        %1310 = vmatmul.mubr.f32.gmra.mxu0 %v1198
        %v1311 = vpop.f32.mrf.mxu0
        %v1312 = vadd.f32 %v1194, %v1311
        %v1313 = vpop.f32.mrf.mxu0
        %1314 = vmatprep.mubr.f32.mxu0 0.0
        %1315 = vmatmul.mubr.f32.gmra.mxu0 %v1201
        %v1316 = vpop.f32.mrf.mxu0
        %v1317 = vadd.f32 %v1194, %v1316
        %v1318 = vpop.f32.mrf.mxu0
        %1319 = vmatprep.mubr.f32.mxu0 0.0
        %1320 = vmatmul.mubr.f32.gmra.mxu0 %v1204
        %v1321 = vpop.f32.mrf.mxu0
        %v1322 = vadd.f32 %v1194, %v1321
        %v1323 = vpop.f32.mrf.mxu0
        %1324 = vmatprep.mubr.f32.mxu0 0.0
        %1325 = vmatmul.mubr.f32.gmra.mxu0 %v1207
        %v1326 = vpop.f32.mrf.mxu0
        %v1327 = vadd.f32 %v1194, %v1326
        %v1328 = vpop.f32.mrf.mxu0
        %1329 = vmatprep.mubr.f32.mxu0 0.0
        %1330 = vmatmul.mubr.f32.gmra.mxu0 %v1210
        %v1331 = vpop.f32.mrf.mxu0
        %v1332 = vadd.f32 %v1194, %v1331
        %v1333 = vpop.f32.mrf.mxu0
        %1334 = vmatprep.mubr.f32.mxu0 0.0
        %1335 = vmatmul.mubr.f32.gmra.mxu0 %v1213
        %v1336 = vpop.f32.mrf.mxu0
        %v1337 = vadd.f32 %v1194, %v1336
        %v1338 = vpop.f32.mrf.mxu0
        %1339 = vmatprep.mubr.f32.mxu0 0.0
        %1340 = vmatmul.mubr.f32.gmra.mxu0 %v1216
        %v1341 = vpop.f32.mrf.mxu0
        %v1342 = vadd.f32 %v1194, %v1341
        %v1343 = vpop.f32.mrf.mxu0
        %1344 = vmatprep.mubr.f32.mxu0 0.0
        %1345 = vmatmul.mubr.f32.gmra.mxu0 %v1219
        %v1346 = vpop.f32.mrf.mxu0
        %v1347 = vadd.f32 %v1194, %v1346
        %v1348 = vpop.f32.mrf.mxu0
        %1349 = vmatprep.mubr.f32.mxu0 0.0
        %1350 = vmatmul.mubr.f32.gmra.mxu0 %v1222
        %v1351 = vpop.f32.mrf.mxu0
        %v1352 = vadd.f32 %v1194, %v1351
        %v1353 = vpop.f32.mrf.mxu0
        %1354 = vmatprep.mubr.f32.mxu0 0.0
        %1355 = vmatmul.mubr.f32.gmra.mxu0 %v1225
        %v1356 = vpop.f32.mrf.mxu0
        %v1357 = vadd.f32 %v1194, %v1356
        %v1358 = vpop.f32.mrf.mxu0
        %1359 = vmatprep.mubr.f32.mxu0 0.0
        %1360 = vmatmul.mubr.f32.gmra.mxu0 %v1228
        %v1361 = vpop.f32.mrf.mxu0
        %v1362 = vadd.f32 %v1194, %v1361
        %v1363 = vpop.f32.mrf.mxu0
        %1364 = vmatprep.mubr.f32.mxu0 0.0
        %1365 = vmatmul.mubr.f32.gmra.mxu0 %v1231
        %v1366 = vpop.f32.mrf.mxu0
        %v1367 = vadd.f32 %v1194, %v1366
        %v1368 = vpop.f32.mrf.mxu0
        %1369 = vmatprep.mubr.f32.mxu0 0.0
        %1370 = vmatmul.mubr.f32.gmra.mxu0 %v1234
        %v1371 = vpop.f32.mrf.mxu0
        %v1372 = vadd.f32 %v1194, %v1371
        %v1373 = vpop.f32.mrf.mxu0
        %1374 = vmatprep.mubr.f32.mxu0 0.0
        %1375 = vmatmul.mubr.f32.gmra.mxu0 %v1237
        %v1376 = vpop.f32.mrf.mxu0
        %v1377 = vadd.f32 %v1194, %v1376
        %v1378 = vpop.f32.mrf.mxu0
        %1379 = vmatprep.mubr.f32.mxu0 0.0
        %1380 = vmatmul.mubr.f32.gmra.mxu0 %v1240
        %v1381 = vpop.f32.mrf.mxu0
        %v1382 = vadd.f32 %v1194, %v1381
        %v1383 = vpop.f32.mrf.mxu0
        %1384 = vmatprep.mubr.f32.mxu0 0.0
        %1385 = vmatmul.mubr.f32.gmra.mxu0 %v1243
        %v1386 = vpop.f32.mrf.mxu0
        %v1387 = vadd.f32 %v1194, %v1386
        %v1388 = vpop.f32.mrf.mxu0
        %1389 = vdwg.mxu0
        %v1390 = vmax.f32 %v1312, 0.0
        %v1391 = vmax.f32 %v1317, 0.0
        %v1392 = vmax.f32 %v1322, 0.0
        %v1393 = vmax.f32 %v1327, 0.0
        %v1394 = vmax.f32 %v1332, 0.0
        %v1395 = vmax.f32 %v1337, 0.0
        %v1396 = vmax.f32 %v1342, 0.0
        %v1397 = vmax.f32 %v1347, 0.0
        %v1398 = vmax.f32 %v1352, 0.0
        %v1399 = vmax.f32 %v1357, 0.0
        %v1400 = vmax.f32 %v1362, 0.0
        %v1401 = vmax.f32 %v1367, 0.0
        %v1402 = vmax.f32 %v1372, 0.0
        %v1403 = vmax.f32 %v1377, 0.0
        %v1404 = vmax.f32 %v1382, 0.0
        %v1405 = vmax.f32 %v1387, 0.0
        %v1406 = vld [vmem:[%s5] sm:$0xff]
        %v1407 = vld [vmem:[%s5 + $0x8] sm:$0xff]
        %v1408 = vld [vmem:[%s5 + $0x10] sm:$0xff]
        %v1409 = vld [vmem:[%s5 + $0x18] sm:$0xff]
        %v1410 = vld [vmem:[%s5 + $0x20] sm:$0xff]
        %v1411 = vld [vmem:[%s5 + $0x28] sm:$0xff]
        %v1412 = vld [vmem:[%s5 + $0x30] sm:$0xff]
        %v1413 = vld [vmem:[%s5 + $0x38] sm:$0xff]
        %v1414 = vld [vmem:[%s6] sm:$0x1]
        %v1416 = vlaneseq
        %v1417 = vshrl.u32 %v1416, 7
        %v1418 = vsub.s32 0, %v1417
        %v1419 = vrot.slane %v1414, %v1418
        %v1422 = vsel %vm1196, %v1390, 0
        %v1425 = vsel %vm1196, %v1391, 0
        %v1428 = vsel %vm1196, %v1392, 0
        %v1431 = vsel %vm1196, %v1393, 0
        %v1434 = vsel %vm1196, %v1394, 0
        %v1437 = vsel %vm1196, %v1395, 0
        %v1440 = vsel %vm1196, %v1396, 0
        %v1443 = vsel %vm1196, %v1397, 0
        %v1446 = vsel %vm1196, %v1398, 0
        %v1449 = vsel %vm1196, %v1399, 0
        %v1452 = vsel %vm1196, %v1400, 0
        %v1455 = vsel %vm1196, %v1401, 0
        %v1458 = vsel %vm1196, %v1402, 0
        %v1461 = vsel %vm1196, %v1403, 0
        %v1464 = vsel %vm1196, %v1404, 0
        %v1467 = vsel %vm1196, %v1405, 0
        %1469 = vmatprep.subr.mxu0 0.0
        %1470 = vmatpush1.msra.mxu0 0.0
        %1471 = vmatprep.subr.mxu0 0.0
        %1472 = vmatpush1.msra.mxu0 0.0
        %1473 = vmatprep.subr.mxu0 0.0
        %1474 = vmatpush1.msra.mxu0 0.0
        %1475 = vmatprep.subr.mxu0 0.0
        %1476 = vmatpush1.msra.mxu0 0.0
        %1477 = vmatprep.subr.mxu0 0.0
        %1478 = vmatpush1.msra.mxu0 0.0
        %1479 = vmatprep.subr.mxu0 0.0
        %1480 = vmatpush1.msra.mxu0 0.0
        %1481 = vmatprep.subr.mxu0 0.0
        %1482 = vmatpush1.msra.mxu0 0.0
        %1483 = vmatprep.subr.mxu0 0.0
        %1484 = vmatpush1.msra.mxu0 0.0
        %1485 = vmatprep.subr.mxu0 0.0
        %1486 = vmatpush1.msra.mxu0 %v1413
        %1487 = vmatprep.subr.mxu0 0.0
        %1488 = vmatpush1.msra.mxu0 %v1412
        %1489 = vmatprep.subr.mxu0 0.0
        %1490 = vmatpush1.msra.mxu0 %v1411
        %1491 = vmatprep.subr.mxu0 0.0
        %1492 = vmatpush1.msra.mxu0 %v1410
        %1493 = vmatprep.subr.mxu0 0.0
        %1494 = vmatpush1.msra.mxu0 %v1409
        %1495 = vmatprep.subr.mxu0 0.0
        %1496 = vmatpush1.msra.mxu0 %v1408
        %1497 = vmatprep.subr.mxu0 0.0
        %1498 = vmatpush1.msra.mxu0 %v1407
        %1499 = vmatprep.subr.mxu0 0.0
        %1500 = vmatpush1.msra.mxu0 %v1406
        %1501 = vmatprep.subr.mxu0 0.0
        %1502 = vmatpush2.msra.mxu0 0.0
        %1503 = vmatprep.subr.mxu0 0.0
        %1504 = vmatpush2.msra.mxu0 0.0
        %1505 = vmatprep.subr.mxu0 0.0
        %1506 = vmatpush2.msra.mxu0 0.0
        %1507 = vmatprep.subr.mxu0 0.0
        %1508 = vmatpush2.msra.mxu0 0.0
        %1509 = vmatprep.subr.mxu0 0.0
        %1510 = vmatpush2.msra.mxu0 0.0
        %1511 = vmatprep.subr.mxu0 0.0
        %1512 = vmatpush2.msra.mxu0 0.0
        %1513 = vmatprep.subr.mxu0 0.0
        %1514 = vmatpush2.msra.mxu0 0.0
        %1515 = vmatprep.subr.mxu0 0.0
        %1516 = vmatpush2.msra.mxu0 0.0
        %1517 = vmatprep.subr.mxu0 0.0
        %1518 = vmatpush2.msra.mxu0 0.0
        %1519 = vmatprep.subr.mxu0 0.0
        %1520 = vmatpush2.msra.mxu0 0.0
        %1521 = vmatprep.subr.mxu0 0.0
        %1522 = vmatpush2.msra.mxu0 0.0
        %1523 = vmatprep.subr.mxu0 0.0
        %1524 = vmatpush2.msra.mxu0 0.0
        %1525 = vmatprep.subr.mxu0 0.0
        %1526 = vmatpush2.msra.mxu0 0.0
        %1527 = vmatprep.subr.mxu0 0.0
        %1528 = vmatpush2.msra.mxu0 0.0
        %1529 = vmatprep.subr.mxu0 0.0
        %1530 = vmatpush2.msra.mxu0 0.0
        %1531 = vmatprep.subr.mxu0 0.0
        %1532 = vmatpush2.msra.mxu0 0.0
        %1533 = vmatprep.mubr.f32.mxu0 0.0
        %1534 = vmatmul.mubr.f32.gmra.mxu0 %v1422
        %v1535 = vpop.f32.mrf.mxu0
        %v1536 = vadd.f32 %v1419, %v1535
        %v1537 = vpop.f32.mrf.mxu0
        %1538 = vmatprep.mubr.f32.mxu0 0.0
        %1539 = vmatmul.mubr.f32.gmra.mxu0 %v1425
        %v1540 = vpop.f32.mrf.mxu0
        %v1541 = vadd.f32 %v1419, %v1540
        %v1542 = vpop.f32.mrf.mxu0
        %1543 = vmatprep.mubr.f32.mxu0 0.0
        %1544 = vmatmul.mubr.f32.gmra.mxu0 %v1428
        %v1545 = vpop.f32.mrf.mxu0
        %v1546 = vadd.f32 %v1419, %v1545
        %v1547 = vpop.f32.mrf.mxu0
        %1548 = vmatprep.mubr.f32.mxu0 0.0
        %1549 = vmatmul.mubr.f32.gmra.mxu0 %v1431
        %v1550 = vpop.f32.mrf.mxu0
        %v1551 = vadd.f32 %v1419, %v1550
        %v1552 = vpop.f32.mrf.mxu0
        %1553 = vmatprep.mubr.f32.mxu0 0.0
        %1554 = vmatmul.mubr.f32.gmra.mxu0 %v1434
        %v1555 = vpop.f32.mrf.mxu0
        %v1556 = vadd.f32 %v1419, %v1555
        %v1557 = vpop.f32.mrf.mxu0
        %1558 = vmatprep.mubr.f32.mxu0 0.0
        %1559 = vmatmul.mubr.f32.gmra.mxu0 %v1437
        %v1560 = vpop.f32.mrf.mxu0
        %v1561 = vadd.f32 %v1419, %v1560
        %v1562 = vpop.f32.mrf.mxu0
        %1563 = vmatprep.mubr.f32.mxu0 0.0
        %1564 = vmatmul.mubr.f32.gmra.mxu0 %v1440
        %v1565 = vpop.f32.mrf.mxu0
        %v1566 = vadd.f32 %v1419, %v1565
        %v1567 = vpop.f32.mrf.mxu0
        %1568 = vmatprep.mubr.f32.mxu0 0.0
        %1569 = vmatmul.mubr.f32.gmra.mxu0 %v1443
        %v1570 = vpop.f32.mrf.mxu0
        %v1571 = vadd.f32 %v1419, %v1570
        %v1572 = vpop.f32.mrf.mxu0
        %1573 = vmatprep.mubr.f32.mxu0 0.0
        %1574 = vmatmul.mubr.f32.gmra.mxu0 %v1446
        %v1575 = vpop.f32.mrf.mxu0
        %v1576 = vadd.f32 %v1419, %v1575
        %v1577 = vpop.f32.mrf.mxu0
        %1578 = vmatprep.mubr.f32.mxu0 0.0
        %1579 = vmatmul.mubr.f32.gmra.mxu0 %v1449
        %v1580 = vpop.f32.mrf.mxu0
        %v1581 = vadd.f32 %v1419, %v1580
        %v1582 = vpop.f32.mrf.mxu0
        %1583 = vmatprep.mubr.f32.mxu0 0.0
        %1584 = vmatmul.mubr.f32.gmra.mxu0 %v1452
        %v1585 = vpop.f32.mrf.mxu0
        %v1586 = vadd.f32 %v1419, %v1585
        %v1587 = vpop.f32.mrf.mxu0
        %1588 = vmatprep.mubr.f32.mxu0 0.0
        %1589 = vmatmul.mubr.f32.gmra.mxu0 %v1455
        %v1590 = vpop.f32.mrf.mxu0
        %v1591 = vadd.f32 %v1419, %v1590
        %v1592 = vpop.f32.mrf.mxu0
        %1593 = vmatprep.mubr.f32.mxu0 0.0
        %1594 = vmatmul.mubr.f32.gmra.mxu0 %v1458
        %v1595 = vpop.f32.mrf.mxu0
        %v1596 = vadd.f32 %v1419, %v1595
        %v1597 = vpop.f32.mrf.mxu0
        %1598 = vmatprep.mubr.f32.mxu0 0.0
        %1599 = vmatmul.mubr.f32.gmra.mxu0 %v1461
        %v1600 = vpop.f32.mrf.mxu0
        %v1601 = vadd.f32 %v1419, %v1600
        %v1602 = vpop.f32.mrf.mxu0
        %1603 = vmatprep.mubr.f32.mxu0 0.0
        %1604 = vmatmul.mubr.f32.gmra.mxu0 %v1464
        %v1605 = vpop.f32.mrf.mxu0
        %v1606 = vadd.f32 %v1419, %v1605
        %v1607 = vpop.f32.mrf.mxu0
        %1608 = vmatprep.mubr.f32.mxu0 0.0
        %1609 = vmatmul.mubr.f32.gmra.mxu0 %v1467
        %v1610 = vpop.f32.mrf.mxu0
        %v1611 = vadd.f32 %v1419, %v1610
        %v1612 = vpop.f32.mrf.mxu0
        %1613 = vdwg.mxu0
        %v1614 = vmax.f32 %v1536, 0.0
        %v1615 = vmax.f32 %v1541, 0.0
        %v1616 = vmax.f32 %v1546, 0.0
        %v1617 = vmax.f32 %v1551, 0.0
        %v1618 = vmax.f32 %v1556, 0.0
        %v1619 = vmax.f32 %v1561, 0.0
        %v1620 = vmax.f32 %v1566, 0.0
        %v1621 = vmax.f32 %v1571, 0.0
        %v1622 = vmax.f32 %v1576, 0.0
        %v1623 = vmax.f32 %v1581, 0.0
        %v1624 = vmax.f32 %v1586, 0.0
        %v1625 = vmax.f32 %v1591, 0.0
        %v1626 = vmax.f32 %v1596, 0.0
        %v1627 = vmax.f32 %v1601, 0.0
        %v1628 = vmax.f32 %v1606, 0.0
        %v1629 = vmax.f32 %v1611, 0.0
        %v1630 = vld [vmem:[%s7] sm:$0xff]
        %v1631 = vld [vmem:[%s7 + $0x8] sm:$0xff]
        %v1632 = vld [vmem:[%s7 + $0x10] sm:$0xff]
        %v1633 = vld [vmem:[%s7 + $0x18] sm:$0xff]
        %v1634 = vld [vmem:[%s7 + $0x20] sm:$0xff]
        %v1635 = vld [vmem:[%s7 + $0x28] sm:$0xff]
        %v1636 = vld [vmem:[%s7 + $0x30] sm:$0xff]
        %v1637 = vld [vmem:[%s7 + $0x38] sm:$0xff]
        %v1638 = vld [vmem:[%s8] sm:$0x1]
        %v1640 = vlaneseq
        %v1641 = vshrl.u32 %v1640, 7
        %v1642 = vsub.s32 0, %v1641
        %v1643 = vrot.slane %v1638, %v1642
        %v1646 = vsel %vm1196, %v1614, 0
        %v1649 = vsel %vm1196, %v1615, 0
        %v1652 = vsel %vm1196, %v1616, 0
        %v1655 = vsel %vm1196, %v1617, 0
        %v1658 = vsel %vm1196, %v1618, 0
        %v1661 = vsel %vm1196, %v1619, 0
        %v1664 = vsel %vm1196, %v1620, 0
        %v1667 = vsel %vm1196, %v1621, 0
        %v1670 = vsel %vm1196, %v1622, 0
        %v1673 = vsel %vm1196, %v1623, 0
        %v1676 = vsel %vm1196, %v1624, 0
        %v1679 = vsel %vm1196, %v1625, 0
        %v1682 = vsel %vm1196, %v1626, 0
        %v1685 = vsel %vm1196, %v1627, 0
        %v1688 = vsel %vm1196, %v1628, 0
        %v1691 = vsel %vm1196, %v1629, 0
        %1693 = vmatprep.subr.mxu0 0.0
        %1694 = vmatpush1.msra.mxu0 0.0
        %1695 = vmatprep.subr.mxu0 0.0
        %1696 = vmatpush1.msra.mxu0 0.0
        %1697 = vmatprep.subr.mxu0 0.0
        %1698 = vmatpush1.msra.mxu0 0.0
        %1699 = vmatprep.subr.mxu0 0.0
        %1700 = vmatpush1.msra.mxu0 0.0
        %1701 = vmatprep.subr.mxu0 0.0
        %1702 = vmatpush1.msra.mxu0 0.0
        %1703 = vmatprep.subr.mxu0 0.0
        %1704 = vmatpush1.msra.mxu0 0.0
        %1705 = vmatprep.subr.mxu0 0.0
        %1706 = vmatpush1.msra.mxu0 0.0
        %1707 = vmatprep.subr.mxu0 0.0
        %1708 = vmatpush1.msra.mxu0 0.0
        %1709 = vmatprep.subr.mxu0 0.0
        %1710 = vmatpush1.msra.mxu0 %v1637
        %1711 = vmatprep.subr.mxu0 0.0
        %1712 = vmatpush1.msra.mxu0 %v1636
        %1713 = vmatprep.subr.mxu0 0.0
        %1714 = vmatpush1.msra.mxu0 %v1635
        %1715 = vmatprep.subr.mxu0 0.0
        %1716 = vmatpush1.msra.mxu0 %v1634
        %1717 = vmatprep.subr.mxu0 0.0
        %1718 = vmatpush1.msra.mxu0 %v1633
        %1719 = vmatprep.subr.mxu0 0.0
        %1720 = vmatpush1.msra.mxu0 %v1632
        %1721 = vmatprep.subr.mxu0 0.0
        %1722 = vmatpush1.msra.mxu0 %v1631
        %1723 = vmatprep.subr.mxu0 0.0
        %1724 = vmatpush1.msra.mxu0 %v1630
        %1725 = vmatprep.subr.mxu0 0.0
        %1726 = vmatpush2.msra.mxu0 0.0
        %1727 = vmatprep.subr.mxu0 0.0
        %1728 = vmatpush2.msra.mxu0 0.0
        %1729 = vmatprep.subr.mxu0 0.0
        %1730 = vmatpush2.msra.mxu0 0.0
        %1731 = vmatprep.subr.mxu0 0.0
        %1732 = vmatpush2.msra.mxu0 0.0
        %1733 = vmatprep.subr.mxu0 0.0
        %1734 = vmatpush2.msra.mxu0 0.0
        %1735 = vmatprep.subr.mxu0 0.0
        %1736 = vmatpush2.msra.mxu0 0.0
        %1737 = vmatprep.subr.mxu0 0.0
        %1738 = vmatpush2.msra.mxu0 0.0
        %1739 = vmatprep.subr.mxu0 0.0
        %1740 = vmatpush2.msra.mxu0 0.0
        %1741 = vmatprep.subr.mxu0 0.0
        %1742 = vmatpush2.msra.mxu0 0.0
        %1743 = vmatprep.subr.mxu0 0.0
        %1744 = vmatpush2.msra.mxu0 0.0
        %1745 = vmatprep.subr.mxu0 0.0
        %1746 = vmatpush2.msra.mxu0 0.0
        %1747 = vmatprep.subr.mxu0 0.0
        %1748 = vmatpush2.msra.mxu0 0.0
        %1749 = vmatprep.subr.mxu0 0.0
        %1750 = vmatpush2.msra.mxu0 0.0
        %1751 = vmatprep.subr.mxu0 0.0
        %1752 = vmatpush2.msra.mxu0 0.0
        %1753 = vmatprep.subr.mxu0 0.0
        %1754 = vmatpush2.msra.mxu0 0.0
        %1755 = vmatprep.subr.mxu0 0.0
        %1756 = vmatpush2.msra.mxu0 0.0
        %1757 = vmatprep.mubr.f32.mxu0 0.0
        %1758 = vmatmul.mubr.f32.gmra.mxu0 %v1646
        %v1759 = vpop.f32.mrf.mxu0
        %v1760 = vadd.f32 %v1643, %v1759
        %v1761 = vpop.f32.mrf.mxu0
        %1762 = vmatprep.mubr.f32.mxu0 0.0
        %1763 = vmatmul.mubr.f32.gmra.mxu0 %v1649
        %v1764 = vpop.f32.mrf.mxu0
        %v1765 = vadd.f32 %v1643, %v1764
        %v1766 = vpop.f32.mrf.mxu0
        %1767 = vmatprep.mubr.f32.mxu0 0.0
        %1768 = vmatmul.mubr.f32.gmra.mxu0 %v1652
        %v1769 = vpop.f32.mrf.mxu0
        %v1770 = vadd.f32 %v1643, %v1769
        %v1771 = vpop.f32.mrf.mxu0
        %1772 = vmatprep.mubr.f32.mxu0 0.0
        %1773 = vmatmul.mubr.f32.gmra.mxu0 %v1655
        %v1774 = vpop.f32.mrf.mxu0
        %v1775 = vadd.f32 %v1643, %v1774
        %v1776 = vpop.f32.mrf.mxu0
        %1777 = vmatprep.mubr.f32.mxu0 0.0
        %1778 = vmatmul.mubr.f32.gmra.mxu0 %v1658
        %v1779 = vpop.f32.mrf.mxu0
        %v1780 = vadd.f32 %v1643, %v1779
        %v1781 = vpop.f32.mrf.mxu0
        %1782 = vmatprep.mubr.f32.mxu0 0.0
        %1783 = vmatmul.mubr.f32.gmra.mxu0 %v1661
        %v1784 = vpop.f32.mrf.mxu0
        %v1785 = vadd.f32 %v1643, %v1784
        %v1786 = vpop.f32.mrf.mxu0
        %1787 = vmatprep.mubr.f32.mxu0 0.0
        %1788 = vmatmul.mubr.f32.gmra.mxu0 %v1664
        %v1789 = vpop.f32.mrf.mxu0
        %v1790 = vadd.f32 %v1643, %v1789
        %v1791 = vpop.f32.mrf.mxu0
        %1792 = vmatprep.mubr.f32.mxu0 0.0
        %1793 = vmatmul.mubr.f32.gmra.mxu0 %v1667
        %v1794 = vpop.f32.mrf.mxu0
        %v1795 = vadd.f32 %v1643, %v1794
        %v1796 = vpop.f32.mrf.mxu0
        %1797 = vmatprep.mubr.f32.mxu0 0.0
        %1798 = vmatmul.mubr.f32.gmra.mxu0 %v1670
        %v1799 = vpop.f32.mrf.mxu0
        %v1800 = vadd.f32 %v1643, %v1799
        %v1801 = vpop.f32.mrf.mxu0
        %1802 = vmatprep.mubr.f32.mxu0 0.0
        %1803 = vmatmul.mubr.f32.gmra.mxu0 %v1673
        %v1804 = vpop.f32.mrf.mxu0
        %v1805 = vadd.f32 %v1643, %v1804
        %v1806 = vpop.f32.mrf.mxu0
        %1807 = vmatprep.mubr.f32.mxu0 0.0
        %1808 = vmatmul.mubr.f32.gmra.mxu0 %v1676
        %v1809 = vpop.f32.mrf.mxu0
        %v1810 = vadd.f32 %v1643, %v1809
        %v1811 = vpop.f32.mrf.mxu0
        %1812 = vmatprep.mubr.f32.mxu0 0.0
        %1813 = vmatmul.mubr.f32.gmra.mxu0 %v1679
        %v1814 = vpop.f32.mrf.mxu0
        %v1815 = vadd.f32 %v1643, %v1814
        %v1816 = vpop.f32.mrf.mxu0
        %1817 = vmatprep.mubr.f32.mxu0 0.0
        %1818 = vmatmul.mubr.f32.gmra.mxu0 %v1682
        %v1819 = vpop.f32.mrf.mxu0
        %v1820 = vadd.f32 %v1643, %v1819
        %v1821 = vpop.f32.mrf.mxu0
        %1822 = vmatprep.mubr.f32.mxu0 0.0
        %1823 = vmatmul.mubr.f32.gmra.mxu0 %v1685
        %v1824 = vpop.f32.mrf.mxu0
        %v1825 = vadd.f32 %v1643, %v1824
        %v1826 = vpop.f32.mrf.mxu0
        %1827 = vmatprep.mubr.f32.mxu0 0.0
        %1828 = vmatmul.mubr.f32.gmra.mxu0 %v1688
        %v1829 = vpop.f32.mrf.mxu0
        %v1830 = vadd.f32 %v1643, %v1829
        %v1831 = vpop.f32.mrf.mxu0
        %1832 = vmatprep.mubr.f32.mxu0 0.0
        %1833 = vmatmul.mubr.f32.gmra.mxu0 %v1691
        %v1834 = vpop.f32.mrf.mxu0
        %v1835 = vadd.f32 %v1643, %v1834
        %v1836 = vpop.f32.mrf.mxu0
        %1837 = vdwg.mxu0
        %v1838 = vlaneseq
        %v1839 = vand.u32 %v1838, 127
        %vm1840 = vcmp.lt.s32.totalorder %v1839, 10
        %v1841 = vsel %vm1840, %v1760, -1e+30
        %v1842 = vsel %vm1840, %v1765, -1e+30
        %v1843 = vsel %vm1840, %v1770, -1e+30
        %v1844 = vsel %vm1840, %v1775, -1e+30
        %v1845 = vsel %vm1840, %v1780, -1e+30
        %v1846 = vsel %vm1840, %v1785, -1e+30
        %v1847 = vsel %vm1840, %v1790, -1e+30
        %v1848 = vsel %vm1840, %v1795, -1e+30
        %v1849 = vsel %vm1840, %v1800, -1e+30
        %v1850 = vsel %vm1840, %v1805, -1e+30
        %v1851 = vsel %vm1840, %v1810, -1e+30
        %v1852 = vsel %vm1840, %v1815, -1e+30
        %v1853 = vsel %vm1840, %v1820, -1e+30
        %v1854 = vsel %vm1840, %v1825, -1e+30
        %v1855 = vsel %vm1840, %v1830, -1e+30
        %v1856 = vsel %vm1840, %v1835, -1e+30
        %1857 = vmax.xlane.f32.xlu0 %v1841
        %v1858 = vpop.xlane.xlu0 %1857
        %1859 = vmax.xlane.f32.xlu0 %v1842
        %v1860 = vpop.xlane.xlu0 %1859
        %1861 = vmax.xlane.f32.xlu0 %v1843
        %v1862 = vpop.xlane.xlu0 %1861
        %1863 = vmax.xlane.f32.xlu0 %v1844
        %v1864 = vpop.xlane.xlu0 %1863
        %1865 = vmax.xlane.f32.xlu0 %v1845
        %v1866 = vpop.xlane.xlu0 %1865
        %1867 = vmax.xlane.f32.xlu0 %v1846
        %v1868 = vpop.xlane.xlu0 %1867
        %1869 = vmax.xlane.f32.xlu0 %v1847
        %v1870 = vpop.xlane.xlu0 %1869
        %1871 = vmax.xlane.f32.xlu0 %v1848
        %v1872 = vpop.xlane.xlu0 %1871
        %1873 = vmax.xlane.f32.xlu0 %v1849
        %v1874 = vpop.xlane.xlu0 %1873
        %1875 = vmax.xlane.f32.xlu0 %v1850
        %v1876 = vpop.xlane.xlu0 %1875
        %1877 = vmax.xlane.f32.xlu0 %v1851
        %v1878 = vpop.xlane.xlu0 %1877
        %1879 = vmax.xlane.f32.xlu0 %v1852
        %v1880 = vpop.xlane.xlu0 %1879
        %1881 = vmax.xlane.f32.xlu0 %v1853
        %v1882 = vpop.xlane.xlu0 %1881
        %1883 = vmax.xlane.f32.xlu0 %v1854
        %v1884 = vpop.xlane.xlu0 %1883
        %1885 = vmax.xlane.f32.xlu0 %v1855
        %v1886 = vpop.xlane.xlu0 %1885
        %1887 = vmax.xlane.f32.xlu0 %v1856
        %v1888 = vpop.xlane.xlu0 %1887
        %v1889 = vsub.f32 %v1760, %v1858
        %v1890 = vsub.f32 %v1765, %v1860
        %v1891 = vsub.f32 %v1770, %v1862
        %v1892 = vsub.f32 %v1775, %v1864
        %v1893 = vsub.f32 %v1780, %v1866
        %v1894 = vsub.f32 %v1785, %v1868
        %v1895 = vsub.f32 %v1790, %v1870
        %v1896 = vsub.f32 %v1795, %v1872
        %v1897 = vsub.f32 %v1800, %v1874
        %v1898 = vsub.f32 %v1805, %v1876
        %v1899 = vsub.f32 %v1810, %v1878
        %v1900 = vsub.f32 %v1815, %v1880
        %v1901 = vsub.f32 %v1820, %v1882
        %v1902 = vsub.f32 %v1825, %v1884
        %v1903 = vsub.f32 %v1830, %v1886
        %v1904 = vsub.f32 %v1835, %v1888
        %v1905 = vsel %vm1840, %v1889, -1e+30
        %v1906 = vsel %vm1840, %v1890, -1e+30
        %v1907 = vsel %vm1840, %v1891, -1e+30
        %v1908 = vsel %vm1840, %v1892, -1e+30
        %v1909 = vsel %vm1840, %v1893, -1e+30
        %v1910 = vsel %vm1840, %v1894, -1e+30
        %v1911 = vsel %vm1840, %v1895, -1e+30
        %v1912 = vsel %vm1840, %v1896, -1e+30
        %v1913 = vsel %vm1840, %v1897, -1e+30
        %v1914 = vsel %vm1840, %v1898, -1e+30
        %v1915 = vsel %vm1840, %v1899, -1e+30
        %v1916 = vsel %vm1840, %v1900, -1e+30
        %v1917 = vsel %vm1840, %v1901, -1e+30
        %v1918 = vsel %vm1840, %v1902, -1e+30
        %v1919 = vsel %vm1840, %v1903, -1e+30
        %v1920 = vsel %vm1840, %v1904, -1e+30
        %v1921 = vmul.f32 %v1905, 1.442695
        %v1922 = vpow.pop %v1921
        %v1923 = vmul.f32 %v1906, 1.442695
        %v1924 = vpow.pop %v1923
        %v1925 = vmul.f32 %v1907, 1.442695
        %v1926 = vpow.pop %v1925
        %v1927 = vmul.f32 %v1908, 1.442695
        %v1928 = vpow.pop %v1927
        %v1929 = vmul.f32 %v1909, 1.442695
        %v1930 = vpow.pop %v1929
        %v1931 = vmul.f32 %v1910, 1.442695
        %v1932 = vpow.pop %v1931
        %v1933 = vmul.f32 %v1911, 1.442695
        %v1934 = vpow.pop %v1933
        %v1935 = vmul.f32 %v1912, 1.442695
        %v1936 = vpow.pop %v1935
        %v1937 = vmul.f32 %v1913, 1.442695
        %v1938 = vpow.pop %v1937
        %v1939 = vmul.f32 %v1914, 1.442695
        %v1940 = vpow.pop %v1939
        %v1941 = vmul.f32 %v1915, 1.442695
        %v1942 = vpow.pop %v1941
        %v1943 = vmul.f32 %v1916, 1.442695
        %v1944 = vpow.pop %v1943
        %v1945 = vmul.f32 %v1917, 1.442695
        %v1946 = vpow.pop %v1945
        %v1947 = vmul.f32 %v1918, 1.442695
        %v1948 = vpow.pop %v1947
        %v1949 = vmul.f32 %v1919, 1.442695
        %v1950 = vpow.pop %v1949
        %v1951 = vmul.f32 %v1920, 1.442695
        %v1952 = vpow.pop %v1951
        %1953 = vadd.xlane.f32.xlu0 %v1922
        %v1954 = vpop.xlane.xlu0 %1953
        %1955 = vadd.xlane.f32.xlu0 %v1924
        %v1956 = vpop.xlane.xlu0 %1955
        %1957 = vadd.xlane.f32.xlu0 %v1926
        %v1958 = vpop.xlane.xlu0 %1957
        %1959 = vadd.xlane.f32.xlu0 %v1928
        %v1960 = vpop.xlane.xlu0 %1959
        %1961 = vadd.xlane.f32.xlu0 %v1930
        %v1962 = vpop.xlane.xlu0 %1961
        %1963 = vadd.xlane.f32.xlu0 %v1932
        %v1964 = vpop.xlane.xlu0 %1963
        %1965 = vadd.xlane.f32.xlu0 %v1934
        %v1966 = vpop.xlane.xlu0 %1965
        %1967 = vadd.xlane.f32.xlu0 %v1936
        %v1968 = vpop.xlane.xlu0 %1967
        %1969 = vadd.xlane.f32.xlu0 %v1938
        %v1970 = vpop.xlane.xlu0 %1969
        %1971 = vadd.xlane.f32.xlu0 %v1940
        %v1972 = vpop.xlane.xlu0 %1971
        %1973 = vadd.xlane.f32.xlu0 %v1942
        %v1974 = vpop.xlane.xlu0 %1973
        %1975 = vadd.xlane.f32.xlu0 %v1944
        %v1976 = vpop.xlane.xlu0 %1975
        %1977 = vadd.xlane.f32.xlu0 %v1946
        %v1978 = vpop.xlane.xlu0 %1977
        %1979 = vadd.xlane.f32.xlu0 %v1948
        %v1980 = vpop.xlane.xlu0 %1979
        %1981 = vadd.xlane.f32.xlu0 %v1950
        %v1982 = vpop.xlane.xlu0 %1981
        %1983 = vadd.xlane.f32.xlu0 %v1952
        %v1984 = vpop.xlane.xlu0 %1983
        %v1985 = vlog2.pop %v1954
        %v1986 = vmul.f32 %v1985, 0.6931472
        %v1987 = vlog2.pop %v1956
        %v1988 = vmul.f32 %v1987, 0.6931472
        %v1989 = vlog2.pop %v1958
        %v1990 = vmul.f32 %v1989, 0.6931472
        %v1991 = vlog2.pop %v1960
        %v1992 = vmul.f32 %v1991, 0.6931472
        %v1993 = vlog2.pop %v1962
        %v1994 = vmul.f32 %v1993, 0.6931472
        %v1995 = vlog2.pop %v1964
        %v1996 = vmul.f32 %v1995, 0.6931472
        %v1997 = vlog2.pop %v1966
        %v1998 = vmul.f32 %v1997, 0.6931472
        %v1999 = vlog2.pop %v1968
        %v2000 = vmul.f32 %v1999, 0.6931472
        %v2001 = vlog2.pop %v1970
        %v2002 = vmul.f32 %v2001, 0.6931472
        %v2003 = vlog2.pop %v1972
        %v2004 = vmul.f32 %v2003, 0.6931472
        %v2005 = vlog2.pop %v1974
        %v2006 = vmul.f32 %v2005, 0.6931472
        %v2007 = vlog2.pop %v1976
        %v2008 = vmul.f32 %v2007, 0.6931472
        %v2009 = vlog2.pop %v1978
        %v2010 = vmul.f32 %v2009, 0.6931472
        %v2011 = vlog2.pop %v1980
        %v2012 = vmul.f32 %v2011, 0.6931472
        %v2013 = vlog2.pop %v1982
        %v2014 = vmul.f32 %v2013, 0.6931472
        %v2015 = vlog2.pop %v1984
        %v2016 = vmul.f32 %v2015, 0.6931472
        %v2017 = vsub.f32 %v1889, %v1986
        %v2018 = vsub.f32 %v1890, %v1988
        %v2019 = vsub.f32 %v1891, %v1990
        %v2020 = vsub.f32 %v1892, %v1992
        %v2021 = vsub.f32 %v1893, %v1994
        %v2022 = vsub.f32 %v1894, %v1996
        %v2023 = vsub.f32 %v1895, %v1998
        %v2024 = vsub.f32 %v1896, %v2000
        %v2025 = vsub.f32 %v1897, %v2002
        %v2026 = vsub.f32 %v1898, %v2004
        %v2027 = vsub.f32 %v1899, %v2006
        %v2028 = vsub.f32 %v1900, %v2008
        %v2029 = vsub.f32 %v1901, %v2010
        %v2030 = vsub.f32 %v1902, %v2012
        %v2031 = vsub.f32 %v1903, %v2014
        %v2032 = vsub.f32 %v1904, %v2016
        %2033 = vst [vmem:[%s351] sm:$0xff] %v2017
        %2034 = vst [vmem:[%s351 + $0x8] sm:$0xff] %v2018
        %2035 = vst [vmem:[%s351 + $0x10] sm:$0xff] %v2019
        %2036 = vst [vmem:[%s351 + $0x18] sm:$0xff] %v2020
        %2037 = vst [vmem:[%s351 + $0x20] sm:$0xff] %v2021
        %2038 = vst [vmem:[%s351 + $0x28] sm:$0xff] %v2022
        %2039 = vst [vmem:[%s351 + $0x30] sm:$0xff] %v2023
        %2040 = vst [vmem:[%s351 + $0x38] sm:$0xff] %v2024
        %2041 = vst [vmem:[%s351 + $0x40] sm:$0xff] %v2025
        %2042 = vst [vmem:[%s351 + $0x48] sm:$0xff] %v2026
        %2043 = vst [vmem:[%s351 + $0x50] sm:$0xff] %v2027
        %2044 = vst [vmem:[%s351 + $0x58] sm:$0xff] %v2028
        %2045 = vst [vmem:[%s351 + $0x60] sm:$0xff] %v2029
        %2046 = vst [vmem:[%s351 + $0x68] sm:$0xff] %v2030
        %2047 = vst [vmem:[%s351 + $0x70] sm:$0xff] %v2031
        %2048 = vst [vmem:[%s351 + $0x78] sm:$0xff] %v2032
        %s2049 = sand.u32 %s228, 1
        %s2050 = scalar_lea.sflag [#allocation4], %s2049
        %s2051 = sand.u32 %s228, 1
        %s2052 = smul.addr %s2051, 128
        %s2053 = scalar_lea.vmem [#allocation5], %s2052
        // Predicated region
        $region61: #{tpu_custom_call.1} parent=55 // pred_check
          %p2054 = pneg %p238
        $region62: #{tpu_custom_call.1} parent=55 // pred_check_branch
          %2056 = sbr.rel (%p2054) target = $region64
        $region63: #{tpu_custom_call.1} parent=55 // pred_region
          %s2057 = smul.u32 16, %s26
          %s2059 = ssub.s32 2048, 2048
          %2060 = vsyncadd %s2050, %s2059
          %s2061 = smul.addr %s2057, 128
          %s2062 = scalar_lea.hbm %s9, %s2061
          %s2063 = sshll.u32 %s2053, 4
          %s2064 = int_to_ptr.vmem [resolvable:$true] %s2063
          %2069 = dma.vmem_to_hbm [thread:$0]  %s2064, 2048, %s2062, %s2050, 128, 128, 8
        $region64: #{tpu_custom_call.1} parent=55 // pred_fallthru
          _
      $region56: #{tpu_custom_call.1} parent=5 // pred_fallthru
        _
      %p2070 = scmp.le.s32.totalorder 2, %s21
      // Predicated region
      $region65: #{tpu_custom_call.1} parent=5 // pred_check
        %p2071 = pneg %p2070
      $region66: #{tpu_custom_call.1} parent=5 // pred_check_branch
        %2073 = sbr.rel (%p2071) target = $region68
      $region67: #{tpu_custom_call.1} parent=5 // pred_region
        %s2074 = ssub.s32 %s21, 2
        // Predicated region
        $region69: #{tpu_custom_call.1} parent=67 // pred_check
          %p2075 = pneg %p244
        $region70: #{tpu_custom_call.1} parent=67 // pred_check_branch
          %2077 = sbr.rel (%p2075) target = $region72
        $region71: #{tpu_custom_call.1} parent=67 // pred_region
          %s2078 = sand.u32 %s229, 1
          %s2079 = scalar_lea.sflag [#allocation4], %s2078
          %s2080 = sand.u32 %s229, 1
          %s2081 = smul.addr %s2080, 128
          %s2082 = scalar_lea.vmem [#allocation5], %s2081
          %2083 = dma.done %s2079, 2048
        $region72: #{tpu_custom_call.1} parent=67 // pred_fallthru
          _
      $region68: #{tpu_custom_call.1} parent=5 // pred_fallthru
        _
    $region6: #{tpu_custom_call.1} parent=1 // loop_footer
      %s25 = sadd.s32 1, %s21
    $region7: #{tpu_custom_call.1} parent=1 // loop_footer_branch
      %20 = sbr.rel target = $region3
    $region8: #{tpu_custom_call.1} parent=1 // loop_exit
      _
    %2084 = vsyncpa [#allocation3], 1
    %s2085 = scalar_lea.sflag [#allocation3], 1
    %2086 = vsyncpa %s2085, 1
    %2087 = vsyncpa [#allocation4], 1
    %s2088 = scalar_lea.sflag [#allocation4], 1
    %2089 = vsyncpa %s2088, 1

</llo_original>
